<compile_context>
chip_gen: v7x
topology: tpu7x:2x2x1
jax: 0.10.0
libtpu: 0.0.40
codegen_flags: <defaults>
</compile_context>

<pallas_src>
import functools

import numpy as np
import jax
import jax.numpy as jnp
from jax.experimental import pallas as pl
from jax.experimental.pallas import tpu as pltpu


# --------------------------------------------------------------------------
# Fused whole-encoder kernel (one image per grid step)
# --------------------------------------------------------------------------
def _make_encoder_kernel(metas, compute_dtype):
    """Builds a kernel closed over static per-layer geometry.

    Ref order: x, (w, b, sel) * n_layers, out, (xpad, stack) * n_layers.
      x:     (1, Cin1, H1*W1)            image (compute dtype)
      w:     (Cout, ks*ks*Cin)           tap-major flattened conv weight
      b:     (Cout, 1)                   bias (f32)
      sel:   (Lm, Ho*Wo)                 0/1 pool-anchor selection (compute dtype)
      out:   (1, Cout_last, Ho*Wo last)  encoder output (f32)
      xpad:  (Cin, Hp*Wp + tail)         zero-padded row-major slab (scratch)
      stack: (ks*ks*Cin, Hp*Wp)          tap-stacked conv RHS (scratch)
    """
    n_layers = len(metas)

    def kernel(*refs):
        x_ref = refs[0]
        p_refs = refs[1:1 + 3 * n_layers]
        o_ref = refs[1 + 3 * n_layers]
        s_refs = refs[2 + 3 * n_layers:]

        cur = x_ref[0]                                  # (Cin, H*W) activations
        for li, m in enumerate(metas):
            w_ref, b_ref, sel_ref = p_refs[3 * li:3 * li + 3]
            xpad_ref, stack_ref = s_refs[2 * li:2 * li + 2]
            ks, pad, Wp = m['ks'], m['pad'], m['Wp']
            L, Lm, p = m['L'], m['Lm'], m['p']
            Hc, Wc, Cin = m['H'], m['W'], m['Cin']

            # ---- in-kernel zero padding: scatter rows into a zeroed slab ----
            xpad_ref[...] = jnp.zeros_like(xpad_ref)
            for hh in range(Hc):
                dst = (hh + pad) * Wp + pad
                xpad_ref[:, dst:dst + Wc] = (
                    cur[:, hh * Wc:(hh + 1) * Wc].astype(compute_dtype))

            # ---- fold all ks*ks taps into one matmul contraction dim --------
            for di in range(ks):
                for dj in range(ks):
                    t = di * ks + dj
                    off = di * Wp + dj
                    stack_ref[t * Cin:(t + 1) * Cin, :] = xpad_ref[:, off:off + L]

            acc = jnp.dot(w_ref[...], stack_ref[...],
                          preferred_element_type=jnp.float32)      # (Cout, L)
            acc = acc + b_ref[...]                                  # f32 bias
            if m['relu']:
                acc = jnp.maximum(acc, 0.0)

            # ---- fused max-pool: elementwise max over p*p shifted slices ----
            mx = acc[:, :Lm]
            for pi in range(p):
                for pj in range(p):
                    if pi == 0 and pj == 0:
                        continue
                    s = pi * Wp + pj
                    mx = jnp.maximum(mx, acc[:, s:s + Lm])

            # ---- anchor gather with the hoisted batch-invariant 0/1 matrix --
            # NOTE: halo positions of `mx` hold finite bias/partial-conv
            # garbage; sel multiplies them by exactly 0, so they never leak.
            # (sel is O(Lm*n_out); for much larger images switch to per-row
            # decimation to keep VMEM bounded.)
            cur = jnp.dot(mx.astype(compute_dtype), sel_ref[...],
                          preferred_element_type=jnp.float32)       # (Cout, Ho*Wo)

        o_ref[0] = cur.astype(o_ref.dtype)

    return kernel


# --------------------------------------------------------------------------
# DeepConvEncoder forward (NCHW in, NCHW out — matches torch semantics)
# --------------------------------------------------------------------------
def deep_conv_encoder_forward(x_nchw, params, convs,
                              compute_dtype=jnp.bfloat16):
    N, C, H, W = x_nchw.shape
    cdt = compute_dtype

    metas = []
    kernel_inputs = []      # flat [w2d, bias, sel] per layer
    in_specs = [pl.BlockSpec((1, C, H * W), lambda n: (n, 0, 0))]
    scratch_shapes = []

    cin, h, w_ = C, H, W
    for (wgt, b), cf in zip(params, convs):
        ks, p, relu = cf['kernel_size'], cf['pool_factor'], cf['relu']
        assert ks % 2 == 1, "torch padding=(ks-1)/2 is only an int for odd ks"
        cout = wgt.shape[0]
        pad = (ks - 1) // 2
        Hp, Wp = h + 2 * pad, w_ + 2 * pad
        L = Hp * Wp                            # conv evaluated at every padded pixel
        tail = (ks - 1) * Wp + (ks - 1)        # keeps every tap slice in bounds
        Lb = L + tail
        Ho, Wo = h // p, w_ // p
        n_out = Ho * Wo
        Lm = (h - p) * Wp + (w_ - p) + 1       # pooled-max slab length

        metas.append(dict(ks=ks, pad=pad, Wp=Wp, L=L, Lm=Lm, p=p, relu=relu,
                          H=h, W=w_, Cin=cin, Cout=cout,
                          Ho=Ho, Wo=Wo, n_out=n_out))

        # torch weight (Cout, Cin, kh, kw) -> (Cout, kh*kw*Cin), tap-major so it
        # matches the in-kernel stacked RHS row order (di, dj, cin).
        w2d = jnp.transpose(wgt, (0, 2, 3, 1)).reshape(cout, ks * ks * cin)
        b2d = b.reshape(cout, 1)

        # Batch-invariant 0/1 anchor-selection matrix (static -> jit constant),
        # hoisted out of the kernel and kept VMEM-resident.
        sel_np = np.zeros((Lm, n_out), np.float32)
        io, jo = np.meshgrid(np.arange(Ho), np.arange(Wo), indexing='ij')
        anchors = (p * io * Wp + p * jo).reshape(-1)
        sel_np[anchors, np.arange(n_out)] = 1.0

        kernel_inputs += [w2d.astype(cdt),
                          b2d.astype(jnp.float32),
                          jnp.asarray(sel_np, dtype=cdt)]
        in_specs += [pl.BlockSpec((cout, ks * ks * cin), lambda n: (0, 0)),
                     pl.BlockSpec((cout, 1), lambda n: (0, 0)),
                     pl.BlockSpec((Lm, n_out), lambda n: (0, 0))]
        scratch_shapes += [pltpu.VMEM((cin, Lb), cdt),
                           pltpu.VMEM((ks * ks * cin, L), cdt)]
        cin, h, w_ = cout, Ho, Wo

    last = metas[-1]
    kernel = _make_encoder_kernel(metas, cdt)

    # One image per grid step: grid length N >= 2 keeps both v7x TensorCores
    # busy ("parallel").  At larger batch, several images per step would make
    # the output lane-dense as well; at n_out=16 per step that lever is moot.
    out = pl.pallas_call(
        kernel,
        out_shape=jax.ShapeDtypeStruct((N, last['Cout'], last['n_out']),
                                       jnp.float32),
        grid=(N,),
        in_specs=in_specs,
        out_specs=pl.BlockSpec((1, last['Cout'], last['n_out']),
                               lambda n: (n, 0, 0)),
        scratch_shapes=scratch_shapes,
        compiler_params=pltpu.CompilerParams(
            dimension_semantics=("parallel",)),
    )(x_nchw.reshape(N, C, H * W).astype(cdt), *kernel_inputs)

    return out.reshape(N, last['Cout'], last['Ho'], last['Wo'])


# --------------------------------------------------------------------------
# Deterministic parameter init (Conv2d default: U(-1/sqrt(fan_in), +))
# --------------------------------------------------------------------------
def init_params(key, input_channels, convs):
    params = []
    cin = input_channels
    for idx, cf in enumerate(convs):
        ks, cout = cf['kernel_size'], cf['conv_kernels']
        kw, kb = jax.random.split(jax.random.fold_in(key, idx))
        bound = 1.0 / float(np.sqrt(cin * ks * ks))
        w = jax.random.uniform(kw, (cout, cin, ks, ks), jnp.float32, -bound, bound)
        b = jax.random.uniform(kb, (cout,), jnp.float32, -bound, bound)
        params.append((w, b))
        cin = cout
    return params


# --------------------------------------------------------------------------
# Pure-JAX reference (sanity check against the Pallas path)
# --------------------------------------------------------------------------
def reference_forward(x_nchw, params, convs):
    x = x_nchw
    for (w, b), cf in zip(params, convs):
        ks, p, relu = cf['kernel_size'], cf['pool_factor'], cf['relu']
        pad = (ks - 1) // 2
        x = jax.lax.conv_general_dilated(
            x, w, window_strides=(1, 1),
            padding=((pad, pad), (pad, pad)),
            dimension_numbers=('NCHW', 'OIHW', 'NCHW'))
        x = x + b.reshape(1, -1, 1, 1)
        if relu:
            x = jnp.maximum(x, 0.0)
        x = jax.lax.reduce_window(
            x, -jnp.inf, jax.lax.max,
            window_dimensions=(1, 1, p, p),
            window_strides=(1, 1, p, p),
            padding='VALID')
    return x


if __name__ == "__main__":
    opts = {
        'input_channels': 4,
        'convs': [
            {'kernel_size': 3, 'conv_kernels': 8, 'relu': True, 'pool_factor': 2},
            {'kernel_size': 3, 'conv_kernels': 16, 'relu': True, 'pool_factor': 2},
        ],
    }
    key = jax.random.PRNGKey(0)
    kx, kp = jax.random.split(key)
    x = jax.random.normal(kx, (2, opts['input_channels'], 16, 16), jnp.float32)
    params = init_params(kp, opts['input_channels'], opts['convs'])

    ref = reference_forward(x, params, opts['convs'])

    # f32 path: tight numerical check of the fused kernel's semantics.
    fwd_f32 = jax.jit(functools.partial(
        deep_conv_encoder_forward, params=params, convs=opts['convs'],
        compute_dtype=jnp.float32))
    out_f32 = jax.block_until_ready(fwd_f32(x))
    assert out_f32.shape == ref.shape == (2, 16, 4, 4), out_f32.shape
    err_f32 = float(jnp.max(jnp.abs(out_f32 - ref)))
    assert err_f32 < 1e-3, f"f32 max abs err {err_f32}"

    # bf16-compute / f32-accumulate path: the HBM/MXU-optimized configuration.
    fwd_bf16 = jax.jit(functools.partial(
        deep_conv_encoder_forward, params=params, convs=opts['convs'],
        compute_dtype=jnp.bfloat16))
    out_bf16 = jax.block_until_ready(fwd_bf16(x))
    err_bf16 = float(jnp.max(jnp.abs(out_bf16 - ref)))
    assert err_bf16 < 1e-1, f"bf16 max abs err {err_bf16}"

    print("KERNEL_OK")
</pallas_src>

<mosaic_0001>
module attributes {stable_mosaic.version = 11 : i64} {
  func.func @kernel(%arg0: i32, %arg1: memref<1x4x256xf32, #tpu.memory_space<vmem>>, %arg2: memref<8x36xf32, #tpu.memory_space<vmem>>, %arg3: memref<8x1xf32, #tpu.memory_space<vmem>>, %arg4: memref<267x64xf32, #tpu.memory_space<vmem>>, %arg5: memref<16x72xf32, #tpu.memory_space<vmem>>, %arg6: memref<16x1xf32, #tpu.memory_space<vmem>>, %arg7: memref<67x16xf32, #tpu.memory_space<vmem>>, %arg8: memref<1x16x16xf32, #tpu.memory_space<vmem>>, %arg9: memref<4x362xf32, #tpu.memory_space<vmem>>, %arg10: memref<36x324xf32, #tpu.memory_space<vmem>>, %arg11: memref<8x122xf32, #tpu.memory_space<vmem>>, %arg12: memref<72x100xf32, #tpu.memory_space<vmem>>) attributes {dimension_semantics = [#tpu.dimension_semantics<parallel>], iteration_bounds = array<i64: 2>, scalar_prefetch = 0 : i64, scratch_operands = 4 : i64, tpu.core_type = #tpu.core_type<tc>, window_params = [{transform_indices = @transform_0, window_bounds = array<i64: 1, 4, 256>}, {pipeline_mode = #tpu.pipeline_mode<synchronous>, transform_indices = @transform_1, window_bounds = array<i64: 8, 36>}, {pipeline_mode = #tpu.pipeline_mode<synchronous>, transform_indices = @transform_2, window_bounds = array<i64: 8, 1>}, {pipeline_mode = #tpu.pipeline_mode<synchronous>, transform_indices = @transform_3, window_bounds = array<i64: 267, 64>}, {pipeline_mode = #tpu.pipeline_mode<synchronous>, transform_indices = @transform_4, window_bounds = array<i64: 16, 72>}, {pipeline_mode = #tpu.pipeline_mode<synchronous>, transform_indices = @transform_5, window_bounds = array<i64: 16, 1>}, {pipeline_mode = #tpu.pipeline_mode<synchronous>, transform_indices = @transform_6, window_bounds = array<i64: 67, 16>}, {transform_indices = @transform_7, window_bounds = array<i64: 1, 16, 16>}]} {
    %c0 = arith.constant 0 : index
    %c0_0 = arith.constant 0 : index
    %c0_1 = arith.constant 0 : index
    %0 = vector.load %arg1[%c0, %c0_0, %c0_1] : memref<1x4x256xf32, #tpu.memory_space<vmem>>, vector<1x4x256xf32>
    %1 = vector.shape_cast %0 : vector<1x4x256xf32> to vector<4x256xf32>
    %cst = arith.constant 0.000000e+00 : f32
    %2 = vector.broadcast %cst : f32 to vector<4x362xf32>
    %c0_2 = arith.constant 0 : index
    %c0_3 = arith.constant 0 : index
    %3 = vector.load %arg9[%c0_2, %c0_3] : memref<4x362xf32, #tpu.memory_space<vmem>>, vector<4x362xf32>
    tpu.vector_store %arg9[%c0_2, %c0_3], %2 {strides = array<i32>} : memref<4x362xf32, #tpu.memory_space<vmem>>, vector<4x362xf32>,
    %4 = vector.extract_strided_slice %1 {offsets = [0, 0], sizes = [4, 16], strides = [1, 1]} : vector<4x256xf32> to vector<4x16xf32>
    %c0_4 = arith.constant 0 : index
    %c19 = arith.constant 19 : index
    %5 = vector.load %arg9[%c0_4, %c19] : memref<4x362xf32, #tpu.memory_space<vmem>>, vector<4x16xf32>
    tpu.vector_store %arg9[%c0_4, %c19], %4 {strides = array<i32>} : memref<4x362xf32, #tpu.memory_space<vmem>>, vector<4x16xf32>,
    %6 = vector.extract_strided_slice %1 {offsets = [0, 16], sizes = [4, 16], strides = [1, 1]} : vector<4x256xf32> to vector<4x16xf32>
    %c0_5 = arith.constant 0 : index
    %c37 = arith.constant 37 : index
    %7 = vector.load %arg9[%c0_5, %c37] : memref<4x362xf32, #tpu.memory_space<vmem>>, vector<4x16xf32>
    tpu.vector_store %arg9[%c0_5, %c37], %6 {strides = array<i32>} : memref<4x362xf32, #tpu.memory_space<vmem>>, vector<4x16xf32>,
    %8 = vector.extract_strided_slice %1 {offsets = [0, 32], sizes = [4, 16], strides = [1, 1]} : vector<4x256xf32> to vector<4x16xf32>
    %c0_6 = arith.constant 0 : index
    %c55 = arith.constant 55 : index
    %9 = vector.load %arg9[%c0_6, %c55] : memref<4x362xf32, #tpu.memory_space<vmem>>, vector<4x16xf32>
    tpu.vector_store %arg9[%c0_6, %c55], %8 {strides = array<i32>} : memref<4x362xf32, #tpu.memory_space<vmem>>, vector<4x16xf32>,
    %10 = vector.extract_strided_slice %1 {offsets = [0, 48], sizes = [4, 16], strides = [1, 1]} : vector<4x256xf32> to vector<4x16xf32>
    %c0_7 = arith.constant 0 : index
    %c73 = arith.constant 73 : index
    %11 = vector.load %arg9[%c0_7, %c73] : memref<4x362xf32, #tpu.memory_space<vmem>>, vector<4x16xf32>
    tpu.vector_store %arg9[%c0_7, %c73], %10 {strides = array<i32>} : memref<4x362xf32, #tpu.memory_space<vmem>>, vector<4x16xf32>,
    %12 = vector.extract_strided_slice %1 {offsets = [0, 64], sizes = [4, 16], strides = [1, 1]} : vector<4x256xf32> to vector<4x16xf32>
    %c0_8 = arith.constant 0 : index
    %c91 = arith.constant 91 : index
    %13 = vector.load %arg9[%c0_8, %c91] : memref<4x362xf32, #tpu.memory_space<vmem>>, vector<4x16xf32>
    tpu.vector_store %arg9[%c0_8, %c91], %12 {strides = array<i32>} : memref<4x362xf32, #tpu.memory_space<vmem>>, vector<4x16xf32>,
    %14 = vector.extract_strided_slice %1 {offsets = [0, 80], sizes = [4, 16], strides = [1, 1]} : vector<4x256xf32> to vector<4x16xf32>
    %c0_9 = arith.constant 0 : index
    %c109 = arith.constant 109 : index
    %15 = vector.load %arg9[%c0_9, %c109] : memref<4x362xf32, #tpu.memory_space<vmem>>, vector<4x16xf32>
    tpu.vector_store %arg9[%c0_9, %c109], %14 {strides = array<i32>} : memref<4x362xf32, #tpu.memory_space<vmem>>, vector<4x16xf32>,
    %16 = vector.extract_strided_slice %1 {offsets = [0, 96], sizes = [4, 16], strides = [1, 1]} : vector<4x256xf32> to vector<4x16xf32>
    %c0_10 = arith.constant 0 : index
    %c127 = arith.constant 127 : index
    %17 = vector.load %arg9[%c0_10, %c127] : memref<4x362xf32, #tpu.memory_space<vmem>>, vector<4x16xf32>
    tpu.vector_store %arg9[%c0_10, %c127], %16 {strides = array<i32>} : memref<4x362xf32, #tpu.memory_space<vmem>>, vector<4x16xf32>,
    %18 = vector.extract_strided_slice %1 {offsets = [0, 112], sizes = [4, 16], strides = [1, 1]} : vector<4x256xf32> to vector<4x16xf32>
    %c0_11 = arith.constant 0 : index
    %c145 = arith.constant 145 : index
    %19 = vector.load %arg9[%c0_11, %c145] : memref<4x362xf32, #tpu.memory_space<vmem>>, vector<4x16xf32>
    tpu.vector_store %arg9[%c0_11, %c145], %18 {strides = array<i32>} : memref<4x362xf32, #tpu.memory_space<vmem>>, vector<4x16xf32>,
    %20 = vector.extract_strided_slice %1 {offsets = [0, 128], sizes = [4, 16], strides = [1, 1]} : vector<4x256xf32> to vector<4x16xf32>
    %c0_12 = arith.constant 0 : index
    %c163 = arith.constant 163 : index
    %21 = vector.load %arg9[%c0_12, %c163] : memref<4x362xf32, #tpu.memory_space<vmem>>, vector<4x16xf32>
    tpu.vector_store %arg9[%c0_12, %c163], %20 {strides = array<i32>} : memref<4x362xf32, #tpu.memory_space<vmem>>, vector<4x16xf32>,
    %22 = vector.extract_strided_slice %1 {offsets = [0, 144], sizes = [4, 16], strides = [1, 1]} : vector<4x256xf32> to vector<4x16xf32>
    %c0_13 = arith.constant 0 : index
    %c181 = arith.constant 181 : index
    %23 = vector.load %arg9[%c0_13, %c181] : memref<4x362xf32, #tpu.memory_space<vmem>>, vector<4x16xf32>
    tpu.vector_store %arg9[%c0_13, %c181], %22 {strides = array<i32>} : memref<4x362xf32, #tpu.memory_space<vmem>>, vector<4x16xf32>,
    %24 = vector.extract_strided_slice %1 {offsets = [0, 160], sizes = [4, 16], strides = [1, 1]} : vector<4x256xf32> to vector<4x16xf32>
    %c0_14 = arith.constant 0 : index
    %c199 = arith.constant 199 : index
    %25 = vector.load %arg9[%c0_14, %c199] : memref<4x362xf32, #tpu.memory_space<vmem>>, vector<4x16xf32>
    tpu.vector_store %arg9[%c0_14, %c199], %24 {strides = array<i32>} : memref<4x362xf32, #tpu.memory_space<vmem>>, vector<4x16xf32>,
    %26 = vector.extract_strided_slice %1 {offsets = [0, 176], sizes = [4, 16], strides = [1, 1]} : vector<4x256xf32> to vector<4x16xf32>
    %c0_15 = arith.constant 0 : index
    %c217 = arith.constant 217 : index
    %27 = vector.load %arg9[%c0_15, %c217] : memref<4x362xf32, #tpu.memory_space<vmem>>, vector<4x16xf32>
    tpu.vector_store %arg9[%c0_15, %c217], %26 {strides = array<i32>} : memref<4x362xf32, #tpu.memory_space<vmem>>, vector<4x16xf32>,
    %28 = vector.extract_strided_slice %1 {offsets = [0, 192], sizes = [4, 16], strides = [1, 1]} : vector<4x256xf32> to vector<4x16xf32>
    %c0_16 = arith.constant 0 : index
    %c235 = arith.constant 235 : index
    %29 = vector.load %arg9[%c0_16, %c235] : memref<4x362xf32, #tpu.memory_space<vmem>>, vector<4x16xf32>
    tpu.vector_store %arg9[%c0_16, %c235], %28 {strides = array<i32>} : memref<4x362xf32, #tpu.memory_space<vmem>>, vector<4x16xf32>,
    %30 = vector.extract_strided_slice %1 {offsets = [0, 208], sizes = [4, 16], strides = [1, 1]} : vector<4x256xf32> to vector<4x16xf32>
    %c0_17 = arith.constant 0 : index
    %c253 = arith.constant 253 : index
    %31 = vector.load %arg9[%c0_17, %c253] : memref<4x362xf32, #tpu.memory_space<vmem>>, vector<4x16xf32>
    tpu.vector_store %arg9[%c0_17, %c253], %30 {strides = array<i32>} : memref<4x362xf32, #tpu.memory_space<vmem>>, vector<4x16xf32>,
    %32 = vector.extract_strided_slice %1 {offsets = [0, 224], sizes = [4, 16], strides = [1, 1]} : vector<4x256xf32> to vector<4x16xf32>
    %c0_18 = arith.constant 0 : index
    %c271 = arith.constant 271 : index
    %33 = vector.load %arg9[%c0_18, %c271] : memref<4x362xf32, #tpu.memory_space<vmem>>, vector<4x16xf32>
    tpu.vector_store %arg9[%c0_18, %c271], %32 {strides = array<i32>} : memref<4x362xf32, #tpu.memory_space<vmem>>, vector<4x16xf32>,
    %34 = vector.extract_strided_slice %1 {offsets = [0, 240], sizes = [4, 16], strides = [1, 1]} : vector<4x256xf32> to vector<4x16xf32>
    %c0_19 = arith.constant 0 : index
    %c289 = arith.constant 289 : index
    %35 = vector.load %arg9[%c0_19, %c289] : memref<4x362xf32, #tpu.memory_space<vmem>>, vector<4x16xf32>
    tpu.vector_store %arg9[%c0_19, %c289], %34 {strides = array<i32>} : memref<4x362xf32, #tpu.memory_space<vmem>>, vector<4x16xf32>,
    %c0_20 = arith.constant 0 : index
    %c0_21 = arith.constant 0 : index
    %36 = vector.load %arg9[%c0_20, %c0_21] : memref<4x362xf32, #tpu.memory_space<vmem>>, vector<4x324xf32>
    %c0_22 = arith.constant 0 : index
    %c0_23 = arith.constant 0 : index
    %37 = vector.load %arg10[%c0_22, %c0_23] : memref<36x324xf32, #tpu.memory_space<vmem>>, vector<4x324xf32>
    tpu.vector_store %arg10[%c0_22, %c0_23], %36 {strides = array<i32>} : memref<36x324xf32, #tpu.memory_space<vmem>>, vector<4x324xf32>,
    %c0_24 = arith.constant 0 : index
    %c1 = arith.constant 1 : index
    %38 = vector.load %arg9[%c0_24, %c1] : memref<4x362xf32, #tpu.memory_space<vmem>>, vector<4x324xf32>
    %c4 = arith.constant 4 : index
    %c0_25 = arith.constant 0 : index
    %39 = vector.load %arg10[%c4, %c0_25] : memref<36x324xf32, #tpu.memory_space<vmem>>, vector<4x324xf32>
    tpu.vector_store %arg10[%c4, %c0_25], %38 {strides = array<i32>} : memref<36x324xf32, #tpu.memory_space<vmem>>, vector<4x324xf32>,
    %c0_26 = arith.constant 0 : index
    %c2 = arith.constant 2 : index
    %40 = vector.load %arg9[%c0_26, %c2] : memref<4x362xf32, #tpu.memory_space<vmem>>, vector<4x324xf32>
    %c8 = arith.constant 8 : index
    %c0_27 = arith.constant 0 : index
    %41 = vector.load %arg10[%c8, %c0_27] : memref<36x324xf32, #tpu.memory_space<vmem>>, vector<4x324xf32>
    tpu.vector_store %arg10[%c8, %c0_27], %40 {strides = array<i32>} : memref<36x324xf32, #tpu.memory_space<vmem>>, vector<4x324xf32>,
    %c0_28 = arith.constant 0 : index
    %c18 = arith.constant 18 : index
    %42 = vector.load %arg9[%c0_28, %c18] : memref<4x362xf32, #tpu.memory_space<vmem>>, vector<4x324xf32>
    %c12 = arith.constant 12 : index
    %c0_29 = arith.constant 0 : index
    %43 = vector.load %arg10[%c12, %c0_29] : memref<36x324xf32, #tpu.memory_space<vmem>>, vector<4x324xf32>
    tpu.vector_store %arg10[%c12, %c0_29], %42 {strides = array<i32>} : memref<36x324xf32, #tpu.memory_space<vmem>>, vector<4x324xf32>,
    %c0_30 = arith.constant 0 : index
    %c19_31 = arith.constant 19 : index
    %44 = vector.load %arg9[%c0_30, %c19_31] : memref<4x362xf32, #tpu.memory_space<vmem>>, vector<4x324xf32>
    %c16 = arith.constant 16 : index
    %c0_32 = arith.constant 0 : index
    %45 = vector.load %arg10[%c16, %c0_32] : memref<36x324xf32, #tpu.memory_space<vmem>>, vector<4x324xf32>
    tpu.vector_store %arg10[%c16, %c0_32], %44 {strides = array<i32>} : memref<36x324xf32, #tpu.memory_space<vmem>>, vector<4x324xf32>,
    %c0_33 = arith.constant 0 : index
    %c20 = arith.constant 20 : index
    %46 = vector.load %arg9[%c0_33, %c20] : memref<4x362xf32, #tpu.memory_space<vmem>>, vector<4x324xf32>
    %c20_34 = arith.constant 20 : index
    %c0_35 = arith.constant 0 : index
    %47 = vector.load %arg10[%c20_34, %c0_35] : memref<36x324xf32, #tpu.memory_space<vmem>>, vector<4x324xf32>
    tpu.vector_store %arg10[%c20_34, %c0_35], %46 {strides = array<i32>} : memref<36x324xf32, #tpu.memory_space<vmem>>, vector<4x324xf32>,
    %c0_36 = arith.constant 0 : index
    %c36 = arith.constant 36 : index
    %48 = vector.load %arg9[%c0_36, %c36] : memref<4x362xf32, #tpu.memory_space<vmem>>, vector<4x324xf32>
    %c24 = arith.constant 24 : index
    %c0_37 = arith.constant 0 : index
    %49 = vector.load %arg10[%c24, %c0_37] : memref<36x324xf32, #tpu.memory_space<vmem>>, vector<4x324xf32>
    tpu.vector_store %arg10[%c24, %c0_37], %48 {strides = array<i32>} : memref<36x324xf32, #tpu.memory_space<vmem>>, vector<4x324xf32>,
    %c0_38 = arith.constant 0 : index
    %c37_39 = arith.constant 37 : index
    %50 = vector.load %arg9[%c0_38, %c37_39] : memref<4x362xf32, #tpu.memory_space<vmem>>, vector<4x324xf32>
    %c28 = arith.constant 28 : index
    %c0_40 = arith.constant 0 : index
    %51 = vector.load %arg10[%c28, %c0_40] : memref<36x324xf32, #tpu.memory_space<vmem>>, vector<4x324xf32>
    tpu.vector_store %arg10[%c28, %c0_40], %50 {strides = array<i32>} : memref<36x324xf32, #tpu.memory_space<vmem>>, vector<4x324xf32>,
    %c0_41 = arith.constant 0 : index
    %c38 = arith.constant 38 : index
    %52 = vector.load %arg9[%c0_41, %c38] : memref<4x362xf32, #tpu.memory_space<vmem>>, vector<4x324xf32>
    %c32 = arith.constant 32 : index
    %c0_42 = arith.constant 0 : index
    %53 = vector.load %arg10[%c32, %c0_42] : memref<36x324xf32, #tpu.memory_space<vmem>>, vector<4x324xf32>
    tpu.vector_store %arg10[%c32, %c0_42], %52 {strides = array<i32>} : memref<36x324xf32, #tpu.memory_space<vmem>>, vector<4x324xf32>,
    %c0_43 = arith.constant 0 : index
    %c0_44 = arith.constant 0 : index
    %54 = vector.load %arg2[%c0_43, %c0_44] : memref<8x36xf32, #tpu.memory_space<vmem>>, vector<8x36xf32>
    %c0_45 = arith.constant 0 : index
    %c0_46 = arith.constant 0 : index
    %55 = vector.load %arg10[%c0_45, %c0_46] : memref<36x324xf32, #tpu.memory_space<vmem>>, vector<36x324xf32>
    %cst_47 = arith.constant dense<0.000000e+00> : vector<8x324xf32>
    %56 = tpu.matmul %54, %55, %cst_47 {dimension_numbers = #tpu.dot_dimension_numbers<[1], [0], [0], [1], [0, 0, 1, 1], [], []>} : vector<8x36xf32>, vector<36x324xf32>, vector<8x324xf32> -> vector<8x324xf32>
    %c0_48 = arith.constant 0 : index
    %c0_49 = arith.constant 0 : index
    %57 = vector.load %arg3[%c0_48, %c0_49] : memref<8x1xf32, #tpu.memory_space<vmem>>, vector<8x1xf32>
    %58 = vector.broadcast %57 : vector<8x1xf32> to vector<8x324xf32>
    %59 = arith.addf %56, %58 : vector<8x324xf32>
    %cst_50 = arith.constant 0.000000e+00 : f32
    %60 = vector.broadcast %cst_50 : f32 to vector<8x324xf32>
    %61 = arith.maximumf %59, %60 : vector<8x324xf32>
    %62 = vector.extract_strided_slice %61 {offsets = [0, 0], sizes = [8, 267], strides = [1, 1]} : vector<8x324xf32> to vector<8x267xf32>
    %63 = vector.extract_strided_slice %61 {offsets = [0, 1], sizes = [8, 267], strides = [1, 1]} : vector<8x324xf32> to vector<8x267xf32>
    %64 = arith.maximumf %62, %63 : vector<8x267xf32>
    %65 = vector.extract_strided_slice %61 {offsets = [0, 18], sizes = [8, 267], strides = [1, 1]} : vector<8x324xf32> to vector<8x267xf32>
    %66 = arith.maximumf %64, %65 : vector<8x267xf32>
    %67 = vector.extract_strided_slice %61 {offsets = [0, 19], sizes = [8, 267], strides = [1, 1]} : vector<8x324xf32> to vector<8x267xf32>
    %68 = arith.maximumf %66, %67 : vector<8x267xf32>
    %c0_51 = arith.constant 0 : index
    %c0_52 = arith.constant 0 : index
    %69 = vector.load %arg4[%c0_51, %c0_52] : memref<267x64xf32, #tpu.memory_space<vmem>>, vector<267x64xf32>
    %cst_53 = arith.constant dense<0.000000e+00> : vector<8x64xf32>
    %70 = tpu.matmul %68, %69, %cst_53 {dimension_numbers = #tpu.dot_dimension_numbers<[1], [0], [0], [1], [0, 0, 1, 1], [], []>} : vector<8x267xf32>, vector<267x64xf32>, vector<8x64xf32> -> vector<8x64xf32>
    %cst_54 = arith.constant 0.000000e+00 : f32
    %71 = vector.broadcast %cst_54 : f32 to vector<8x122xf32>
    %c0_55 = arith.constant 0 : index
    %c0_56 = arith.constant 0 : index
    %72 = vector.load %arg11[%c0_55, %c0_56] : memref<8x122xf32, #tpu.memory_space<vmem>>, vector<8x122xf32>
    tpu.vector_store %arg11[%c0_55, %c0_56], %71 {strides = array<i32>} : memref<8x122xf32, #tpu.memory_space<vmem>>, vector<8x122xf32>,
    %73 = vector.extract_strided_slice %70 {offsets = [0, 0], sizes = [8, 8], strides = [1, 1]} : vector<8x64xf32> to vector<8x8xf32>
    %c0_57 = arith.constant 0 : index
    %c11 = arith.constant 11 : index
    %74 = vector.load %arg11[%c0_57, %c11] : memref<8x122xf32, #tpu.memory_space<vmem>>, vector<8x8xf32>
    tpu.vector_store %arg11[%c0_57, %c11], %73 {strides = array<i32>} : memref<8x122xf32, #tpu.memory_space<vmem>>, vector<8x8xf32>,
    %75 = vector.extract_strided_slice %70 {offsets = [0, 8], sizes = [8, 8], strides = [1, 1]} : vector<8x64xf32> to vector<8x8xf32>
    %c0_58 = arith.constant 0 : index
    %c21 = arith.constant 21 : index
    %76 = vector.load %arg11[%c0_58, %c21] : memref<8x122xf32, #tpu.memory_space<vmem>>, vector<8x8xf32>
    tpu.vector_store %arg11[%c0_58, %c21], %75 {strides = array<i32>} : memref<8x122xf32, #tpu.memory_space<vmem>>, vector<8x8xf32>,
    %77 = vector.extract_strided_slice %70 {offsets = [0, 16], sizes = [8, 8], strides = [1, 1]} : vector<8x64xf32> to vector<8x8xf32>
    %c0_59 = arith.constant 0 : index
    %c31 = arith.constant 31 : index
    %78 = vector.load %arg11[%c0_59, %c31] : memref<8x122xf32, #tpu.memory_space<vmem>>, vector<8x8xf32>
    tpu.vector_store %arg11[%c0_59, %c31], %77 {strides = array<i32>} : memref<8x122xf32, #tpu.memory_space<vmem>>, vector<8x8xf32>,
    %79 = vector.extract_strided_slice %70 {offsets = [0, 24], sizes = [8, 8], strides = [1, 1]} : vector<8x64xf32> to vector<8x8xf32>
    %c0_60 = arith.constant 0 : index
    %c41 = arith.constant 41 : index
    %80 = vector.load %arg11[%c0_60, %c41] : memref<8x122xf32, #tpu.memory_space<vmem>>, vector<8x8xf32>
    tpu.vector_store %arg11[%c0_60, %c41], %79 {strides = array<i32>} : memref<8x122xf32, #tpu.memory_space<vmem>>, vector<8x8xf32>,
    %81 = vector.extract_strided_slice %70 {offsets = [0, 32], sizes = [8, 8], strides = [1, 1]} : vector<8x64xf32> to vector<8x8xf32>
    %c0_61 = arith.constant 0 : index
    %c51 = arith.constant 51 : index
    %82 = vector.load %arg11[%c0_61, %c51] : memref<8x122xf32, #tpu.memory_space<vmem>>, vector<8x8xf32>
    tpu.vector_store %arg11[%c0_61, %c51], %81 {strides = array<i32>} : memref<8x122xf32, #tpu.memory_space<vmem>>, vector<8x8xf32>,
    %83 = vector.extract_strided_slice %70 {offsets = [0, 40], sizes = [8, 8], strides = [1, 1]} : vector<8x64xf32> to vector<8x8xf32>
    %c0_62 = arith.constant 0 : index
    %c61 = arith.constant 61 : index
    %84 = vector.load %arg11[%c0_62, %c61] : memref<8x122xf32, #tpu.memory_space<vmem>>, vector<8x8xf32>
    tpu.vector_store %arg11[%c0_62, %c61], %83 {strides = array<i32>} : memref<8x122xf32, #tpu.memory_space<vmem>>, vector<8x8xf32>,
    %85 = vector.extract_strided_slice %70 {offsets = [0, 48], sizes = [8, 8], strides = [1, 1]} : vector<8x64xf32> to vector<8x8xf32>
    %c0_63 = arith.constant 0 : index
    %c71 = arith.constant 71 : index
    %86 = vector.load %arg11[%c0_63, %c71] : memref<8x122xf32, #tpu.memory_space<vmem>>, vector<8x8xf32>
    tpu.vector_store %arg11[%c0_63, %c71], %85 {strides = array<i32>} : memref<8x122xf32, #tpu.memory_space<vmem>>, vector<8x8xf32>,
    %87 = vector.extract_strided_slice %70 {offsets = [0, 56], sizes = [8, 8], strides = [1, 1]} : vector<8x64xf32> to vector<8x8xf32>
    %c0_64 = arith.constant 0 : index
    %c81 = arith.constant 81 : index
    %88 = vector.load %arg11[%c0_64, %c81] : memref<8x122xf32, #tpu.memory_space<vmem>>, vector<8x8xf32>
    tpu.vector_store %arg11[%c0_64, %c81], %87 {strides = array<i32>} : memref<8x122xf32, #tpu.memory_space<vmem>>, vector<8x8xf32>,
    %c0_65 = arith.constant 0 : index
    %c0_66 = arith.constant 0 : index
    %89 = vector.load %arg11[%c0_65, %c0_66] : memref<8x122xf32, #tpu.memory_space<vmem>>, vector<8x100xf32>
    %c0_67 = arith.constant 0 : index
    %c0_68 = arith.constant 0 : index
    %90 = vector.load %arg12[%c0_67, %c0_68] : memref<72x100xf32, #tpu.memory_space<vmem>>, vector<8x100xf32>
    tpu.vector_store %arg12[%c0_67, %c0_68], %89 {strides = array<i32>} : memref<72x100xf32, #tpu.memory_space<vmem>>, vector<8x100xf32>,
    %c0_69 = arith.constant 0 : index
    %c1_70 = arith.constant 1 : index
    %91 = vector.load %arg11[%c0_69, %c1_70] : memref<8x122xf32, #tpu.memory_space<vmem>>, vector<8x100xf32>
    %c8_71 = arith.constant 8 : index
    %c0_72 = arith.constant 0 : index
    %92 = vector.load %arg12[%c8_71, %c0_72] : memref<72x100xf32, #tpu.memory_space<vmem>>, vector<8x100xf32>
    tpu.vector_store %arg12[%c8_71, %c0_72], %91 {strides = array<i32>} : memref<72x100xf32, #tpu.memory_space<vmem>>, vector<8x100xf32>,
    %c0_73 = arith.constant 0 : index
    %c2_74 = arith.constant 2 : index
    %93 = vector.load %arg11[%c0_73, %c2_74] : memref<8x122xf32, #tpu.memory_space<vmem>>, vector<8x100xf32>
    %c16_75 = arith.constant 16 : index
    %c0_76 = arith.constant 0 : index
    %94 = vector.load %arg12[%c16_75, %c0_76] : memref<72x100xf32, #tpu.memory_space<vmem>>, vector<8x100xf32>
    tpu.vector_store %arg12[%c16_75, %c0_76], %93 {strides = array<i32>} : memref<72x100xf32, #tpu.memory_space<vmem>>, vector<8x100xf32>,
    %c0_77 = arith.constant 0 : index
    %c10 = arith.constant 10 : index
    %95 = vector.load %arg11[%c0_77, %c10] : memref<8x122xf32, #tpu.memory_space<vmem>>, vector<8x100xf32>
    %c24_78 = arith.constant 24 : index
    %c0_79 = arith.constant 0 : index
    %96 = vector.load %arg12[%c24_78, %c0_79] : memref<72x100xf32, #tpu.memory_space<vmem>>, vector<8x100xf32>
    tpu.vector_store %arg12[%c24_78, %c0_79], %95 {strides = array<i32>} : memref<72x100xf32, #tpu.memory_space<vmem>>, vector<8x100xf32>,
    %c0_80 = arith.constant 0 : index
    %c11_81 = arith.constant 11 : index
    %97 = vector.load %arg11[%c0_80, %c11_81] : memref<8x122xf32, #tpu.memory_space<vmem>>, vector<8x100xf32>
    %c32_82 = arith.constant 32 : index
    %c0_83 = arith.constant 0 : index
    %98 = vector.load %arg12[%c32_82, %c0_83] : memref<72x100xf32, #tpu.memory_space<vmem>>, vector<8x100xf32>
    tpu.vector_store %arg12[%c32_82, %c0_83], %97 {strides = array<i32>} : memref<72x100xf32, #tpu.memory_space<vmem>>, vector<8x100xf32>,
    %c0_84 = arith.constant 0 : index
    %c12_85 = arith.constant 12 : index
    %99 = vector.load %arg11[%c0_84, %c12_85] : memref<8x122xf32, #tpu.memory_space<vmem>>, vector<8x100xf32>
    %c40 = arith.constant 40 : index
    %c0_86 = arith.constant 0 : index
    %100 = vector.load %arg12[%c40, %c0_86] : memref<72x100xf32, #tpu.memory_space<vmem>>, vector<8x100xf32>
    tpu.vector_store %arg12[%c40, %c0_86], %99 {strides = array<i32>} : memref<72x100xf32, #tpu.memory_space<vmem>>, vector<8x100xf32>,
    %c0_87 = arith.constant 0 : index
    %c20_88 = arith.constant 20 : index
    %101 = vector.load %arg11[%c0_87, %c20_88] : memref<8x122xf32, #tpu.memory_space<vmem>>, vector<8x100xf32>
    %c48 = arith.constant 48 : index
    %c0_89 = arith.constant 0 : index
    %102 = vector.load %arg12[%c48, %c0_89] : memref<72x100xf32, #tpu.memory_space<vmem>>, vector<8x100xf32>
    tpu.vector_store %arg12[%c48, %c0_89], %101 {strides = array<i32>} : memref<72x100xf32, #tpu.memory_space<vmem>>, vector<8x100xf32>,
    %c0_90 = arith.constant 0 : index
    %c21_91 = arith.constant 21 : index
    %103 = vector.load %arg11[%c0_90, %c21_91] : memref<8x122xf32, #tpu.memory_space<vmem>>, vector<8x100xf32>
    %c56 = arith.constant 56 : index
    %c0_92 = arith.constant 0 : index
    %104 = vector.load %arg12[%c56, %c0_92] : memref<72x100xf32, #tpu.memory_space<vmem>>, vector<8x100xf32>
    tpu.vector_store %arg12[%c56, %c0_92], %103 {strides = array<i32>} : memref<72x100xf32, #tpu.memory_space<vmem>>, vector<8x100xf32>,
    %c0_93 = arith.constant 0 : index
    %c22 = arith.constant 22 : index
    %105 = vector.load %arg11[%c0_93, %c22] : memref<8x122xf32, #tpu.memory_space<vmem>>, vector<8x100xf32>
    %c64 = arith.constant 64 : index
    %c0_94 = arith.constant 0 : index
    %106 = vector.load %arg12[%c64, %c0_94] : memref<72x100xf32, #tpu.memory_space<vmem>>, vector<8x100xf32>
    tpu.vector_store %arg12[%c64, %c0_94], %105 {strides = array<i32>} : memref<72x100xf32, #tpu.memory_space<vmem>>, vector<8x100xf32>,
    %c0_95 = arith.constant 0 : index
    %c0_96 = arith.constant 0 : index
    %107 = vector.load %arg5[%c0_95, %c0_96] : memref<16x72xf32, #tpu.memory_space<vmem>>, vector<16x72xf32>
    %c0_97 = arith.constant 0 : index
    %c0_98 = arith.constant 0 : index
    %108 = vector.load %arg12[%c0_97, %c0_98] : memref<72x100xf32, #tpu.memory_space<vmem>>, vector<72x100xf32>
    %cst_99 = arith.constant dense<0.000000e+00> : vector<16x100xf32>
    %109 = tpu.matmul %107, %108, %cst_99 {dimension_numbers = #tpu.dot_dimension_numbers<[1], [0], [0], [1], [0, 0, 1, 1], [], []>} : vector<16x72xf32>, vector<72x100xf32>, vector<16x100xf32> -> vector<16x100xf32>
    %c0_100 = arith.constant 0 : index
    %c0_101 = arith.constant 0 : index
    %110 = vector.load %arg6[%c0_100, %c0_101] : memref<16x1xf32, #tpu.memory_space<vmem>>, vector<16x1xf32>
    %111 = vector.broadcast %110 : vector<16x1xf32> to vector<16x100xf32>
    %112 = arith.addf %109, %111 : vector<16x100xf32>
    %cst_102 = arith.constant 0.000000e+00 : f32
    %113 = vector.broadcast %cst_102 : f32 to vector<16x100xf32>
    %114 = arith.maximumf %112, %113 : vector<16x100xf32>
    %115 = vector.extract_strided_slice %114 {offsets = [0, 0], sizes = [16, 67], strides = [1, 1]} : vector<16x100xf32> to vector<16x67xf32>
    %116 = vector.extract_strided_slice %114 {offsets = [0, 1], sizes = [16, 67], strides = [1, 1]} : vector<16x100xf32> to vector<16x67xf32>
    %117 = arith.maximumf %115, %116 : vector<16x67xf32>
    %118 = vector.extract_strided_slice %114 {offsets = [0, 10], sizes = [16, 67], strides = [1, 1]} : vector<16x100xf32> to vector<16x67xf32>
    %119 = arith.maximumf %117, %118 : vector<16x67xf32>
    %120 = vector.extract_strided_slice %114 {offsets = [0, 11], sizes = [16, 67], strides = [1, 1]} : vector<16x100xf32> to vector<16x67xf32>
    %121 = arith.maximumf %119, %120 : vector<16x67xf32>
    %c0_103 = arith.constant 0 : index
    %c0_104 = arith.constant 0 : index
    %122 = vector.load %arg7[%c0_103, %c0_104] : memref<67x16xf32, #tpu.memory_space<vmem>>, vector<67x16xf32>
    %cst_105 = arith.constant dense<0.000000e+00> : vector<16x16xf32>
    %123 = tpu.matmul %121, %122, %cst_105 {dimension_numbers = #tpu.dot_dimension_numbers<[1], [0], [0], [1], [0, 0, 1, 1], [], []>} : vector<16x67xf32>, vector<67x16xf32>, vector<16x16xf32> -> vector<16x16xf32>
    %c0_106 = arith.constant 0 : index
    %c0_107 = arith.constant 0 : index
    %c0_108 = arith.constant 0 : index
    %124 = vector.load %arg8[%c0_106, %c0_107, %c0_108] : memref<1x16x16xf32, #tpu.memory_space<vmem>>, vector<1x16x16xf32>
    %125 = vector.shape_cast %124 : vector<1x16x16xf32> to vector<16x16xf32>
    %126 = vector.shape_cast %123 : vector<16x16xf32> to vector<1x16x16xf32>
    tpu.vector_store %arg8[%c0_106, %c0_107, %c0_108], %126 {strides = array<i32>} : memref<1x16x16xf32, #tpu.memory_space<vmem>>, vector<1x16x16xf32>,
    return
  }
  func.func @transform_0(%arg0: i32) -> (i32, i32, i32) {
    %c0_i32 = arith.constant 0 : i32
    %c0_i32_0 = arith.constant 0 : i32
    %c0_i32_1 = arith.constant 0 : i32
    return %arg0, %c0_i32, %c0_i32_0 : i32, i32, i32
  }
  func.func @transform_1(%arg0: i32) -> (i32, i32) {
    %c0_i32 = arith.constant 0 : i32
    %c0_i32_0 = arith.constant 0 : i32
    %c0_i32_1 = arith.constant 0 : i32
    return %c0_i32, %c0_i32_0 : i32, i32
  }
  func.func @transform_2(%arg0: i32) -> (i32, i32) {
    %c0_i32 = arith.constant 0 : i32
    %c0_i32_0 = arith.constant 0 : i32
    %c0_i32_1 = arith.constant 0 : i32
    return %c0_i32, %c0_i32_0 : i32, i32
  }
  func.func @transform_3(%arg0: i32) -> (i32, i32) {
    %c0_i32 = arith.constant 0 : i32
    %c0_i32_0 = arith.constant 0 : i32
    %c0_i32_1 = arith.constant 0 : i32
    return %c0_i32, %c0_i32_0 : i32, i32
  }
  func.func @transform_4(%arg0: i32) -> (i32, i32) {
    %c0_i32 = arith.constant 0 : i32
    %c0_i32_0 = arith.constant 0 : i32
    %c0_i32_1 = arith.constant 0 : i32
    return %c0_i32, %c0_i32_0 : i32, i32
  }
  func.func @transform_5(%arg0: i32) -> (i32, i32) {
    %c0_i32 = arith.constant 0 : i32
    %c0_i32_0 = arith.constant 0 : i32
    %c0_i32_1 = arith.constant 0 : i32
    return %c0_i32, %c0_i32_0 : i32, i32
  }
  func.func @transform_6(%arg0: i32) -> (i32, i32) {
    %c0_i32 = arith.constant 0 : i32
    %c0_i32_0 = arith.constant 0 : i32
    %c0_i32_1 = arith.constant 0 : i32
    return %c0_i32, %c0_i32_0 : i32, i32
  }
  func.func @transform_7(%arg0: i32) -> (i32, i32, i32) {
    %c0_i32 = arith.constant 0 : i32
    %c0_i32_0 = arith.constant 0 : i32
    %c0_i32_1 = arith.constant 0 : i32
    return %arg0, %c0_i32, %c0_i32_0 : i32, i32, i32
  }
}

</mosaic_0001>

<llo_original>
// kernel: deep_conv_encoder_forward.1
$region0: #{deep_conv_encoder_forward.1}
  #allocation0 [shape = 'u32[]', space=smem, size = 0x4, offset = 0x4, fixed_abs, tag = 'smem constant byte address 0x4 - core index']
  #allocation1 [shape = 'u32[144,128]{1,0:T(1,128)}', space=vmem, size = 0x12000, scoped, tag = 'internal scratch']
  #allocation2 [shape = 'f32[4,362]{1,0:T(4,128)}', space=vmem, size = 0x1800, scoped, tag = 'scratch operand']
  #allocation3 [shape = 'f32[36,324]{1,0:T(8,128)}', space=vmem, size = 0xf000, scoped, tag = 'scratch operand']
  #allocation4 [shape = 'f32[8,122]{1,0:T(8,128)}', space=vmem, size = 0x1000, scoped, tag = 'scratch operand']
  #allocation5 [shape = 'f32[72,100]{1,0:T(8,128)}', space=vmem, size = 0x9000, scoped, tag = 'scratch operand']
  %s0 = inlined_call_operand.vmem [shape: f32[2,4,256], index: 0, kind: input, shape index: {}]
  %s1 = inlined_call_operand.vmem [shape: f32[8,36], index: 1, kind: input, shape index: {}]
  %s2 = inlined_call_operand.vmem [shape: f32[8,1], index: 2, kind: input, shape index: {}]
  %s3 = inlined_call_operand.hbm [shape: f32[267,64], index: 3, kind: input, shape index: {}]
  %s4 = inlined_call_operand.vmem [shape: f32[16,72], index: 4, kind: input, shape index: {}]
  %s5 = inlined_call_operand.vmem [shape: f32[16,1], index: 5, kind: input, shape index: {}]
  %s6 = inlined_call_operand.vmem [shape: f32[67,16], index: 6, kind: input, shape index: {}]
  %s7 = inlined_call_operand.vmem [shape: f32[2,16,16], index: 7, kind: output, shape index: {}]
  %s8 = sld [smem:[#allocation0]]
  $region65: #{deep_conv_encoder_forward.1} parent=0
    _
  %s10 = ssub.s32 1, %s8
  %s11 = scalar_select 0, %s10, %s8
  $region1: #{deep_conv_encoder_forward.1} parent=0
    #allocation6 [shape = 'u8[139264]{0}', space=vmem, size = 0x22000, scoped, tag = 'input window, operand 3, single buffered']
    #allocation7 [shape = 's32[2]{0}', space=sflag, size = 0x8, scoped, tag = 'scoped memory for deep_conv_encoder_forward.1']
    %12 = vsyncpa [#allocation7], 0
    loop: start=0, step=1, limit=4
    $region2: #{deep_conv_encoder_forward.1} parent=1 // loop_pre_header
      _
    $region3: #{deep_conv_encoder_forward.1} parent=1 // loop_header
      %s14 = sphi 0, %s18
      %p15 = scmp.ge.s32.totalorder %s14, 4
      %s24 = sphi 0, %s26
      %s27 = sphi 0, %s24
      %s28 = sphi 0, %s27
      %s44 = sphi 0, %s28
      %s48 = sphi 0, %s48
      %s50 = sphi 0, %s48
      %s51 = sphi 0, %s50
      %s65 = sphi 0, %s51
      %s69 = sphi 0, %s69
      %s71 = sphi 0, %s69
      %s72 = sphi 0, %s71
      %s86 = sphi 0, %s72
      %s90 = sphi 0, %s90
      %s92 = sphi 0, %s90
      %s93 = sphi 0, %s92
      %s107 = sphi 0, %s93
      %s111 = sphi 0, %s111
      %s113 = sphi 0, %s111
      %s114 = sphi 0, %s113
      %s128 = sphi 0, %s114
      %s132 = sphi 0, %s132
      %s134 = sphi 0, %s132
      %s135 = sphi 0, %s134
      %s149 = sphi 0, %s135
      %s153 = sphi 0, %s153
      %s155 = sphi 0, %s153
      %s156 = sphi 0, %s155
      %s170 = sphi 0, %s156
      %s176 = sphi 0, %s178
      %s179 = sphi 0, %s176
      %s180 = sphi 0, %s179
      %s196 = sphi 0, %s180
    $region4: #{deep_conv_encoder_forward.1} parent=1 // loop_header_branch
      %17 = sbr.rel (%p15) target = $region8
    $region5: #{deep_conv_encoder_forward.1} parent=1 // loop_body
      %s19 = ssub.s32 %s14, 1
      %s20 = ssub.s32 %s14, 2
      %s21 = sadd.s32 %s14, 1
      %s22 = ssub.s32 %s14, %s21
      %p23 = scmp.eq.s32.totalorder %s22, 0
      %s25 = sadd.s32 %s24, 1
      %s26 = scalar_select %p23, %s24, %s25
      %p29 = pneg %p23
      %p30 = scmp.eq.s32.totalorder %s14, 1
      %p31 = por %p29, %p30
      %p32 = scmp.ne.s32.totalorder %s24, %s27
      %p33 = scmp.eq.s32.totalorder %s14, 0
      %p34 = por %p32, %p33
      %p35 = scmp.ne.s32.totalorder %s24, %s27
      %p36 = scmp.eq.s32.totalorder %s19, 1
      %p37 = por %p35, %p36
      %p38 = scmp.ne.s32.totalorder %s27, %s28
      %p39 = scmp.eq.s32.totalorder %s19, 0
      %p40 = por %p38, %p39
      %p41 = scmp.ne.s32.totalorder %s27, %s28
      %p42 = scmp.eq.s32.totalorder %s20, 1
      %p43 = por %p41, %p42
      %p45 = scmp.ne.s32.totalorder %s28, %s44
      %p46 = scmp.eq.s32.totalorder %s20, 0
      %p47 = por %p45, %p46
      %s49 = sadd.s32 %s48, 1
      %p52 = scmp.eq.s32.totalorder %s14, 1
      %p53 = scmp.ne.s32.totalorder %s48, %s50
      %p54 = scmp.eq.s32.totalorder %s14, 0
      %p55 = por %p53, %p54
      %p56 = scmp.ne.s32.totalorder %s48, %s50
      %p57 = scmp.eq.s32.totalorder %s19, 1
      %p58 = por %p56, %p57
      %p59 = scmp.ne.s32.totalorder %s50, %s51
      %p60 = scmp.eq.s32.totalorder %s19, 0
      %p61 = por %p59, %p60
      %p62 = scmp.ne.s32.totalorder %s50, %s51
      %p63 = scmp.eq.s32.totalorder %s20, 1
      %p64 = por %p62, %p63
      %p66 = scmp.ne.s32.totalorder %s51, %s65
      %p67 = scmp.eq.s32.totalorder %s20, 0
      %p68 = por %p66, %p67
      %s70 = sadd.s32 %s69, 1
      %p73 = scmp.eq.s32.totalorder %s14, 1
      %p74 = scmp.ne.s32.totalorder %s69, %s71
      %p75 = scmp.eq.s32.totalorder %s14, 0
      %p76 = por %p74, %p75
      %p77 = scmp.ne.s32.totalorder %s69, %s71
      %p78 = scmp.eq.s32.totalorder %s19, 1
      %p79 = por %p77, %p78
      %p80 = scmp.ne.s32.totalorder %s71, %s72
      %p81 = scmp.eq.s32.totalorder %s19, 0
      %p82 = por %p80, %p81
      %p83 = scmp.ne.s32.totalorder %s71, %s72
      %p84 = scmp.eq.s32.totalorder %s20, 1
      %p85 = por %p83, %p84
      %p87 = scmp.ne.s32.totalorder %s72, %s86
      %p88 = scmp.eq.s32.totalorder %s20, 0
      %p89 = por %p87, %p88
      %s91 = sadd.s32 %s90, 1
      %p94 = scmp.eq.s32.totalorder %s14, 1
      %p95 = scmp.ne.s32.totalorder %s90, %s92
      %p96 = scmp.eq.s32.totalorder %s14, 0
      %p97 = por %p95, %p96
      %p98 = scmp.ne.s32.totalorder %s90, %s92
      %p99 = scmp.eq.s32.totalorder %s19, 1
      %p100 = por %p98, %p99
      %p101 = scmp.ne.s32.totalorder %s92, %s93
      %p102 = scmp.eq.s32.totalorder %s19, 0
      %p103 = por %p101, %p102
      %p104 = scmp.ne.s32.totalorder %s92, %s93
      %p105 = scmp.eq.s32.totalorder %s20, 1
      %p106 = por %p104, %p105
      %p108 = scmp.ne.s32.totalorder %s93, %s107
      %p109 = scmp.eq.s32.totalorder %s20, 0
      %p110 = por %p108, %p109
      %s112 = sadd.s32 %s111, 1
      %p115 = scmp.eq.s32.totalorder %s14, 1
      %p116 = scmp.ne.s32.totalorder %s111, %s113
      %p117 = scmp.eq.s32.totalorder %s14, 0
      %p118 = por %p116, %p117
      %p119 = scmp.ne.s32.totalorder %s111, %s113
      %p120 = scmp.eq.s32.totalorder %s19, 1
      %p121 = por %p119, %p120
      %p122 = scmp.ne.s32.totalorder %s113, %s114
      %p123 = scmp.eq.s32.totalorder %s19, 0
      %p124 = por %p122, %p123
      %p125 = scmp.ne.s32.totalorder %s113, %s114
      %p126 = scmp.eq.s32.totalorder %s20, 1
      %p127 = por %p125, %p126
      %p129 = scmp.ne.s32.totalorder %s114, %s128
      %p130 = scmp.eq.s32.totalorder %s20, 0
      %p131 = por %p129, %p130
      %s133 = sadd.s32 %s132, 1
      %p136 = scmp.eq.s32.totalorder %s14, 1
      %p137 = scmp.ne.s32.totalorder %s132, %s134
      %p138 = scmp.eq.s32.totalorder %s14, 0
      %p139 = por %p137, %p138
      %p140 = scmp.ne.s32.totalorder %s132, %s134
      %p141 = scmp.eq.s32.totalorder %s19, 1
      %p142 = por %p140, %p141
      %p143 = scmp.ne.s32.totalorder %s134, %s135
      %p144 = scmp.eq.s32.totalorder %s19, 0
      %p145 = por %p143, %p144
      %p146 = scmp.ne.s32.totalorder %s134, %s135
      %p147 = scmp.eq.s32.totalorder %s20, 1
      %p148 = por %p146, %p147
      %p150 = scmp.ne.s32.totalorder %s135, %s149
      %p151 = scmp.eq.s32.totalorder %s20, 0
      %p152 = por %p150, %p151
      %s154 = sadd.s32 %s153, 1
      %p157 = scmp.eq.s32.totalorder %s14, 1
      %p158 = scmp.ne.s32.totalorder %s153, %s155
      %p159 = scmp.eq.s32.totalorder %s14, 0
      %p160 = por %p158, %p159
      %p161 = scmp.ne.s32.totalorder %s153, %s155
      %p162 = scmp.eq.s32.totalorder %s19, 1
      %p163 = por %p161, %p162
      %p164 = scmp.ne.s32.totalorder %s155, %s156
      %p165 = scmp.eq.s32.totalorder %s19, 0
      %p166 = por %p164, %p165
      %p167 = scmp.ne.s32.totalorder %s155, %s156
      %p168 = scmp.eq.s32.totalorder %s20, 1
      %p169 = por %p167, %p168
      %p171 = scmp.ne.s32.totalorder %s156, %s170
      %p172 = scmp.eq.s32.totalorder %s20, 0
      %p173 = por %p171, %p172
      %s174 = ssub.s32 %s14, %s21
      %p175 = scmp.eq.s32.totalorder %s174, 0
      %s177 = sadd.s32 %s176, 1
      %s178 = scalar_select %p175, %s176, %s177
      %p181 = pneg %p175
      %p182 = scmp.eq.s32.totalorder %s14, 1
      %p183 = por %p181, %p182
      %p184 = scmp.ne.s32.totalorder %s176, %s179
      %p185 = scmp.eq.s32.totalorder %s14, 0
      %p186 = por %p184, %p185
      %p187 = scmp.ne.s32.totalorder %s176, %s179
      %p188 = scmp.eq.s32.totalorder %s19, 1
      %p189 = por %p187, %p188
      %p190 = scmp.ne.s32.totalorder %s179, %s180
      %p191 = scmp.eq.s32.totalorder %s19, 0
      %p192 = por %p190, %p191
      %p193 = scmp.ne.s32.totalorder %s179, %s180
      %p194 = scmp.eq.s32.totalorder %s20, 1
      %p195 = por %p193, %p194
      %p197 = scmp.ne.s32.totalorder %s180, %s196
      %p198 = scmp.eq.s32.totalorder %s20, 0
      %p199 = por %p197, %p198
      %p200 = scmp.le.s32.totalorder 1, %s14
      %p201 = scmp.lt.s32.totalorder %s14, 3
      %p202 = pnand %p200, %p201
      %p203 = pneg %p202
      // Predicated region
      $region9: #{deep_conv_encoder_forward.1} parent=5 // pred_check
        _
      $region10: #{deep_conv_encoder_forward.1} parent=5 // pred_check_branch
        %205 = sbr.rel (%p202) target = $region12
      $region11: #{deep_conv_encoder_forward.1} parent=5 // pred_region
        %s206 = ssub.s32 %s14, 1
        // Predicated region
        $region13: #{deep_conv_encoder_forward.1} parent=11 // pred_check
          %p207 = pneg %p61
        $region14: #{deep_conv_encoder_forward.1} parent=11 // pred_check_branch
          %209 = sbr.rel (%p207) target = $region16
        $region15: #{deep_conv_encoder_forward.1} parent=11 // pred_region
          _
        $region16: #{deep_conv_encoder_forward.1} parent=11 // pred_fallthru
          _
        // Predicated region
        $region17: #{deep_conv_encoder_forward.1} parent=11 // pred_check
          %p210 = pneg %p82
        $region18: #{deep_conv_encoder_forward.1} parent=11 // pred_check_branch
          %212 = sbr.rel (%p210) target = $region20
        $region19: #{deep_conv_encoder_forward.1} parent=11 // pred_region
          _
        $region20: #{deep_conv_encoder_forward.1} parent=11 // pred_fallthru
          _
        // Predicated region
        $region21: #{deep_conv_encoder_forward.1} parent=11 // pred_check
          %p213 = pneg %p103
        $region22: #{deep_conv_encoder_forward.1} parent=11 // pred_check_branch
          %215 = sbr.rel (%p213) target = $region24
        $region23: #{deep_conv_encoder_forward.1} parent=11 // pred_region
          %s217 = ssub.s32 4352, 4352
          %218 = vsyncadd [#allocation7], %s217
          %s219 = sshll.u32 [#allocation6], 4
          %s220 = int_to_ptr.vmem [resolvable:$true] %s219
          %225 = dma.hbm_to_vmem [thread:$0]  %s3, 4352, %s220, [#allocation7], 128, 128, 8
        $region24: #{deep_conv_encoder_forward.1} parent=11 // pred_fallthru
          _
        // Predicated region
        $region25: #{deep_conv_encoder_forward.1} parent=11 // pred_check
          %p226 = pneg %p124
        $region26: #{deep_conv_encoder_forward.1} parent=11 // pred_check_branch
          %228 = sbr.rel (%p226) target = $region28
        $region27: #{deep_conv_encoder_forward.1} parent=11 // pred_region
          _
        $region28: #{deep_conv_encoder_forward.1} parent=11 // pred_fallthru
          _
        // Predicated region
        $region29: #{deep_conv_encoder_forward.1} parent=11 // pred_check
          %p229 = pneg %p145
        $region30: #{deep_conv_encoder_forward.1} parent=11 // pred_check_branch
          %231 = sbr.rel (%p229) target = $region32
        $region31: #{deep_conv_encoder_forward.1} parent=11 // pred_region
          _
        $region32: #{deep_conv_encoder_forward.1} parent=11 // pred_fallthru
          _
        // Predicated region
        $region33: #{deep_conv_encoder_forward.1} parent=11 // pred_check
          %p232 = pneg %p166
        $region34: #{deep_conv_encoder_forward.1} parent=11 // pred_check_branch
          %234 = sbr.rel (%p232) target = $region36
        $region35: #{deep_conv_encoder_forward.1} parent=11 // pred_region
          _
        $region36: #{deep_conv_encoder_forward.1} parent=11 // pred_fallthru
          _
      $region12: #{deep_conv_encoder_forward.1} parent=5 // pred_fallthru
        _
      %p235 = scmp.lt.s32.totalorder %s14, 2
      // Predicated region
      $region37: #{deep_conv_encoder_forward.1} parent=5 // pred_check
        %p236 = pneg %p235
      $region38: #{deep_conv_encoder_forward.1} parent=5 // pred_check_branch
        %238 = sbr.rel (%p236) target = $region40
      $region39: #{deep_conv_encoder_forward.1} parent=5 // pred_region
        // Predicated region
        $region41: #{deep_conv_encoder_forward.1} parent=39 // pred_check
          %p239 = pneg %p34
        $region42: #{deep_conv_encoder_forward.1} parent=39 // pred_check_branch
          %241 = sbr.rel (%p239) target = $region44
        $region43: #{deep_conv_encoder_forward.1} parent=39 // pred_region
          %p242 = scmp.lt.s32.totalorder %s14, 1
          %s243 = scalar_select %p242, %s14, 1
          %s244 = smul.addr %s243, 2
          %s245 = smul.addr %s244, 4
          %s246 = scalar_lea.vmem %s0, %s245
        $region44: #{deep_conv_encoder_forward.1} parent=39 // pred_fallthru
          _
      $region40: #{deep_conv_encoder_forward.1} parent=5 // pred_fallthru
        _
      %p247 = scmp.le.s32.totalorder 1, %s14
      %p248 = scmp.lt.s32.totalorder %s14, 3
      %p249 = pnand %p247, %p248
      %p250 = pneg %p249
      // Predicated region
      $region45: #{deep_conv_encoder_forward.1} parent=5 // pred_check
        _
      $region46: #{deep_conv_encoder_forward.1} parent=5 // pred_check_branch
        %252 = sbr.rel (%p249) target = $region48
      $region47: #{deep_conv_encoder_forward.1} parent=5 // pred_region
        %s253 = ssub.s32 %s14, 1
        // Predicated region
        $region49: #{deep_conv_encoder_forward.1} parent=47 // pred_check
          %p254 = pneg %p103
        $region50: #{deep_conv_encoder_forward.1} parent=47 // pred_check_branch
          %256 = sbr.rel (%p254) target = $region52
        $region51: #{deep_conv_encoder_forward.1} parent=47 // pred_region
          %257 = dma.done [#allocation7], 4352
        $region52: #{deep_conv_encoder_forward.1} parent=47 // pred_fallthru
          _
        %p258 = scmp.lt.s32.totalorder %s19, 1
        %s259 = scalar_select %p258, %s19, 1
        %s260 = smul.addr %s259, 2
        %s261 = smul.addr %s260, 4
        %s262 = scalar_lea.vmem %s0, %s261
        %p263 = pneg %p40
        %p264 = pneg %p37
        %p265 = pneg %p61
        %p266 = pneg %p58
        %p267 = pneg %p82
        %p268 = pneg %p79
        %p269 = pneg %p103
        %p270 = pneg %p100
        %p271 = pneg %p124
        %p272 = pneg %p121
        %p273 = pneg %p145
        %p274 = pneg %p142
        %p275 = pneg %p166
        %p276 = pneg %p163
        %p277 = pneg %p192
        %p278 = pneg %p189
        %p279 = scmp.lt.s32.totalorder %s19, 1
        %s280 = scalar_select %p279, %s19, 1
        %s281 = smul.addr %s280, 2
        %s282 = smul.addr %s281, 8
        %s283 = scalar_lea.vmem %s7, %s282
        %p284 = scmp.lt.s32.totalorder %s19, 1
        %s285 = scalar_select %p284, %s19, 1
        %s286 = smul.addr %s285, 2
        %s287 = smul.addr %s286, 4
        %s288 = scalar_lea.vmem %s0, %s287
        %p289 = scmp.lt.s32.totalorder %s19, 1
        %s290 = scalar_select %p289, %s19, 1
        %s291 = smul.addr %s290, 2
        %s292 = smul.addr %s291, 8
        %s293 = scalar_lea.vmem %s7, %s292
        %v294 = vld [vmem:[%s288] sm:$0xff]
        %295 = vst [vmem:[#allocation2] sm:$0xff] 0.0
        %vm296 = vcmask 863232
        %297 = vst.msk [vmem:[#allocation2 + $0x8] sm:$0xf] %vm296, 0.0
        %299 = vrot.lane.b32.xlu0 %v294, 19
        %v300 = vpop.permute.xlu0 %299
        %vm302 = vcmask 281752
        %303 = vst.msk [vmem:[#allocation2] sm:$0xf] %vm302, %v300
        %304 = vrot.lane.b32.xlu0 %v294, 21
        %v305 = vpop.permute.xlu0 %304
        %vm307 = vcmask 429352
        %308 = vst.msk [vmem:[#allocation2] sm:$0xf] %vm307, %v305
        %309 = vrot.lane.b32.xlu0 %v294, 23
        %v310 = vpop.permute.xlu0 %309
        %vm312 = vcmask 576952
        %313 = vst.msk [vmem:[#allocation2] sm:$0xf] %vm312, %v310
        %314 = vrot.lane.b32.xlu0 %v294, 25
        %v315 = vpop.permute.xlu0 %314
        %vm317 = vcmask 724552
        %318 = vst.msk [vmem:[#allocation2] sm:$0xf] %vm317, %v315
        %319 = vrot.lane.b32.xlu0 %v294, 27
        %v320 = vpop.permute.xlu0 %319
        %vm322 = vcmask 872152
        %323 = vst.msk [vmem:[#allocation2] sm:$0xf] %vm322, %v320
        %324 = vrot.lane.b32.xlu0 %v294, 29
        %v325 = vpop.permute.xlu0 %324
        %vm327 = vcmask 1019752
        %328 = vst.msk [vmem:[#allocation2] sm:$0xf] %vm327, %v325
        %329 = vrot.lane.b32.xlu0 %v294, 31
        %v330 = vpop.permute.xlu0 %329
        %v331 = vrot.slane %v330, 4
        %vm332 = vcmask 252928
        %v333 = vsel %vm332, %v331, %v330
        %vm335 = vcmask 1044472
        %vm336 = vcmask 121860
        %vm337 = vmor %vm336, %vm335
        %338 = vst.msk [vmem:[#allocation2] sm:$0xff] %vm337, %v333
        %339 = vrot.lane.b32.xlu0 %v294, 33
        %v340 = vpop.permute.xlu0 %339
        %vm342 = vcmask 265352
        %343 = vst.msk [vmem:[#allocation2 + $0x4] sm:$0xf] %vm342, %v340
        %344 = vrot.lane.b32.xlu0 %v294, 35
        %v345 = vpop.permute.xlu0 %344
        %v346 = vrot.slane %v345, 4
        %vm347 = vcmask 285696
        %v348 = vsel %vm347, %v345, %v346
        %vm350 = vcmask 412952
        %351 = vst.msk [vmem:[#allocation2 + $0x4] sm:$0xf] %vm350, %v348
        %352 = vrot.lane.b32.xlu0 %v294, 37
        %v353 = vpop.permute.xlu0 %352
        %v354 = vrot.slane %v353, 4
        %vm355 = vcmask 302080
        %v356 = vsel %vm355, %v353, %v354
        %vm358 = vcmask 560552
        %359 = vst.msk [vmem:[#allocation2 + $0x4] sm:$0xf] %vm358, %v356
        %360 = vrot.lane.b32.xlu0 %v294, 39
        %v361 = vpop.permute.xlu0 %360
        %v362 = vrot.slane %v361, 4
        %vm363 = vcmask 318464
        %v364 = vsel %vm363, %v361, %v362
        %vm366 = vcmask 708152
        %367 = vst.msk [vmem:[#allocation2 + $0x4] sm:$0xf] %vm366, %v364
        %368 = vrot.lane.b32.xlu0 %v294, 41
        %v369 = vpop.permute.xlu0 %368
        %v370 = vrot.slane %v369, 4
        %vm371 = vcmask 334848
        %v372 = vsel %vm371, %v369, %v370
        %vm374 = vcmask 855752
        %375 = vst.msk [vmem:[#allocation2 + $0x4] sm:$0xf] %vm374, %v372
        %376 = vrot.lane.b32.xlu0 %v294, 43
        %v377 = vpop.permute.xlu0 %376
        %v378 = vrot.slane %v377, 4
        %vm379 = vcmask 351232
        %v380 = vsel %vm379, %v377, %v378
        %vm382 = vcmask 1003352
        %383 = vst.msk [vmem:[#allocation2 + $0x4] sm:$0xf] %vm382, %v380
        %384 = vrot.lane.b32.xlu0 %v294, 45
        %v385 = vpop.permute.xlu0 %384
        %v386 = vrot.slane %v385, 4
        %vm387 = vcmask 367616
        %v388 = vsel %vm387, %v385, %v386
        %vm390 = vcmask 1044456
        %vm391 = vcmask 105476
        %vm392 = vmor %vm391, %vm390
        %393 = vst.msk [vmem:[#allocation2 + $0x4] sm:$0xff] %vm392, %v388
        %394 = vrot.lane.b32.xlu0 %v294, 47
        %v395 = vpop.permute.xlu0 %394
        %v396 = vrot.slane %v395, 4
        %vm398 = vcmask 248952
        %399 = vst.msk [vmem:[#allocation2 + $0x8] sm:$0xf] %vm398, %v396
        %400 = vrot.lane.b32.xlu0 %v294, 49
        %v401 = vpop.permute.xlu0 %400
        %v402 = vrot.slane %v401, 4
        %vm404 = vcmask 396552
        %405 = vst.msk [vmem:[#allocation2 + $0x8] sm:$0xf] %vm404, %v402
        %v406 = vld [vmem:[#allocation2] sm:$0xff]
        %v407 = vld [vmem:[#allocation2 + $0x8] sm:$0xf]
        %v409 = vcombine.high %v406, %v406
        %411 = vst [vmem:[#allocation3] sm:$0xf] %v406
        %412 = vst [vmem:[#allocation3 + $0x8] sm:$0xf] %v409
        %vm413 = vcmask 551936
        %414 = vst.msk [vmem:[#allocation3 + $0x10] sm:$0xf] %vm413, %v407
        %v415 = vld [vmem:[#allocation2] sm:$0xff]
        %v416 = vld [vmem:[#allocation2 + $0x8] sm:$0xf]
        %v419 = vcombine.low %v415, %v415
        %v420 = vcombine.low %v416, %v416
        %421 = vrot.lane.b32.xlu0 %v419, 127
        %v422 = vpop.permute.xlu0 %421
        %423 = vrot.lane.b32.xlu0 %v415, 127
        %v424 = vpop.permute.xlu0 %423
        %425 = vrot.lane.b32.xlu0 %v420, 127
        %v426 = vpop.permute.xlu0 %425
        %vm427 = vcmask 1039360
        %v428 = vsel %vm427, %v422, %v424
        %v429 = vsel %vm427, %v424, %v426
        %433 = vst [vmem:[#allocation3] sm:$0xf0] %v428
        %434 = vst [vmem:[#allocation3 + $0x8] sm:$0xf0] %v429
        %vm435 = vcmask 556036
        %436 = vst.msk [vmem:[#allocation3 + $0x10] sm:$0xf0] %vm435, %v426
        %v437 = vld [vmem:[#allocation2] sm:$0xff]
        %v438 = vld [vmem:[#allocation2 + $0x8] sm:$0xf]
        %v441 = vcombine.high %v437, %v437
        %442 = vrot.lane.b32.xlu0 %v437, 126
        %v443 = vpop.permute.xlu0 %442
        %444 = vrot.lane.b32.xlu0 %v441, 126
        %v445 = vpop.permute.xlu0 %444
        %446 = vrot.lane.b32.xlu0 %v438, 126
        %v447 = vpop.permute.xlu0 %446
        %vm448 = vcmask 1031168
        %v449 = vsel %vm448, %v443, %v445
        %v450 = vsel %vm448, %v445, %v447
        %454 = vst [vmem:[#allocation3 + $0x18] sm:$0xf] %v449
        %455 = vst [vmem:[#allocation3 + $0x20] sm:$0xf] %v450
        %456 = vst.msk [vmem:[#allocation3 + $0x28] sm:$0xf] %vm413, %v447
        %v457 = vld [vmem:[#allocation2] sm:$0xff]
        %v458 = vld [vmem:[#allocation2 + $0x8] sm:$0xf]
        %v461 = vcombine.low %v457, %v457
        %v462 = vcombine.low %v458, %v458
        %463 = vrot.lane.b32.xlu0 %v461, 110
        %v464 = vpop.permute.xlu0 %463
        %465 = vrot.lane.b32.xlu0 %v457, 110
        %v466 = vpop.permute.xlu0 %465
        %467 = vrot.lane.b32.xlu0 %v462, 110
        %v468 = vpop.permute.xlu0 %467
        %vm469 = vcmask 900096
        %v470 = vsel %vm469, %v464, %v466
        %v471 = vsel %vm469, %v466, %v468
        %475 = vst [vmem:[#allocation3 + $0x18] sm:$0xf0] %v470
        %476 = vst [vmem:[#allocation3 + $0x20] sm:$0xf0] %v471
        %477 = vst.msk [vmem:[#allocation3 + $0x28] sm:$0xf0] %vm435, %v468
        %v478 = vld [vmem:[#allocation2] sm:$0xff]
        %v479 = vld [vmem:[#allocation2 + $0x8] sm:$0xf]
        %v482 = vcombine.high %v478, %v478
        %483 = vrot.lane.b32.xlu0 %v478, 109
        %v484 = vpop.permute.xlu0 %483
        %485 = vrot.lane.b32.xlu0 %v482, 109
        %v486 = vpop.permute.xlu0 %485
        %487 = vrot.lane.b32.xlu0 %v479, 109
        %v488 = vpop.permute.xlu0 %487
        %vm489 = vcmask 891904
        %v490 = vsel %vm489, %v484, %v486
        %v491 = vsel %vm489, %v486, %v488
        %495 = vst [vmem:[#allocation3 + $0x30] sm:$0xf] %v490
        %496 = vst [vmem:[#allocation3 + $0x38] sm:$0xf] %v491
        %497 = vst.msk [vmem:[#allocation3 + $0x40] sm:$0xf] %vm413, %v488
        %v498 = vld [vmem:[#allocation2] sm:$0xff]
        %v499 = vld [vmem:[#allocation2 + $0x8] sm:$0xf]
        %v502 = vcombine.low %v498, %v498
        %v503 = vcombine.low %v499, %v499
        %504 = vrot.lane.b32.xlu0 %v502, 108
        %v505 = vpop.permute.xlu0 %504
        %506 = vrot.lane.b32.xlu0 %v498, 108
        %v507 = vpop.permute.xlu0 %506
        %508 = vrot.lane.b32.xlu0 %v503, 108
        %v509 = vpop.permute.xlu0 %508
        %vm510 = vcmask 883712
        %v511 = vsel %vm510, %v505, %v507
        %v512 = vsel %vm510, %v507, %v509
        %516 = vst [vmem:[#allocation3 + $0x30] sm:$0xf0] %v511
        %517 = vst [vmem:[#allocation3 + $0x38] sm:$0xf0] %v512
        %518 = vst.msk [vmem:[#allocation3 + $0x40] sm:$0xf0] %vm435, %v509
        %v519 = vld [vmem:[#allocation2] sm:$0xff]
        %v520 = vld [vmem:[#allocation2 + $0x8] sm:$0xf]
        %v523 = vcombine.high %v519, %v519
        %524 = vrot.lane.b32.xlu0 %v519, 92
        %v525 = vpop.permute.xlu0 %524
        %526 = vrot.lane.b32.xlu0 %v523, 92
        %v527 = vpop.permute.xlu0 %526
        %528 = vrot.lane.b32.xlu0 %v520, 92
        %v529 = vpop.permute.xlu0 %528
        %vm530 = vcmask 752640
        %v531 = vsel %vm530, %v525, %v527
        %v532 = vsel %vm530, %v527, %v529
        %536 = vst [vmem:[#allocation3 + $0x48] sm:$0xf] %v531
        %537 = vst [vmem:[#allocation3 + $0x50] sm:$0xf] %v532
        %538 = vst.msk [vmem:[#allocation3 + $0x58] sm:$0xf] %vm413, %v529
        %v539 = vld [vmem:[#allocation2] sm:$0xff]
        %v540 = vld [vmem:[#allocation2 + $0x8] sm:$0xf]
        %v543 = vcombine.low %v539, %v539
        %v544 = vcombine.low %v540, %v540
        %545 = vrot.lane.b32.xlu0 %v543, 91
        %v546 = vpop.permute.xlu0 %545
        %547 = vrot.lane.b32.xlu0 %v539, 91
        %v548 = vpop.permute.xlu0 %547
        %549 = vrot.lane.b32.xlu0 %v544, 91
        %v550 = vpop.permute.xlu0 %549
        %vm551 = vcmask 744448
        %v552 = vsel %vm551, %v546, %v548
        %v553 = vsel %vm551, %v548, %v550
        %557 = vst [vmem:[#allocation3 + $0x48] sm:$0xf0] %v552
        %558 = vst [vmem:[#allocation3 + $0x50] sm:$0xf0] %v553
        %559 = vst.msk [vmem:[#allocation3 + $0x58] sm:$0xf0] %vm435, %v550
        %v560 = vld [vmem:[#allocation2] sm:$0xff]
        %v561 = vld [vmem:[#allocation2 + $0x8] sm:$0xf]
        %v564 = vcombine.high %v560, %v560
        %565 = vrot.lane.b32.xlu0 %v560, 90
        %v566 = vpop.permute.xlu0 %565
        %567 = vrot.lane.b32.xlu0 %v564, 90
        %v568 = vpop.permute.xlu0 %567
        %569 = vrot.lane.b32.xlu0 %v561, 90
        %v570 = vpop.permute.xlu0 %569
        %vm571 = vcmask 736256
        %v572 = vsel %vm571, %v566, %v568
        %v573 = vsel %vm571, %v568, %v570
        %577 = vst [vmem:[#allocation3 + $0x60] sm:$0xf] %v572
        %578 = vst [vmem:[#allocation3 + $0x68] sm:$0xf] %v573
        %579 = vst.msk [vmem:[#allocation3 + $0x70] sm:$0xf] %vm413, %v570
        %v580 = vld [vmem:[%s1] sm:$0xff]
        %v581 = vld [vmem:[#allocation3] sm:$0xff]
        %v582 = vld [vmem:[#allocation3 + $0x8] sm:$0xff]
        %v583 = vld [vmem:[#allocation3 + $0x10] sm:$0xff]
        %v584 = vld [vmem:[#allocation3 + $0x18] sm:$0xff]
        %v585 = vld [vmem:[#allocation3 + $0x20] sm:$0xff]
        %v586 = vld [vmem:[#allocation3 + $0x28] sm:$0xff]
        %v587 = vld [vmem:[#allocation3 + $0x30] sm:$0xff]
        %v588 = vld [vmem:[#allocation3 + $0x38] sm:$0xff]
        %v589 = vld [vmem:[#allocation3 + $0x40] sm:$0xff]
        %v590 = vld [vmem:[#allocation3 + $0x48] sm:$0xff]
        %v591 = vld [vmem:[#allocation3 + $0x50] sm:$0xff]
        %v592 = vld [vmem:[#allocation3 + $0x58] sm:$0xff]
        %v593 = vld [vmem:[#allocation3 + $0x60] sm:$0xf]
        %v594 = vld [vmem:[#allocation3 + $0x68] sm:$0xf]
        %v595 = vld [vmem:[#allocation3 + $0x70] sm:$0xf]
        %v596 = vld [vmem:[%s2] sm:$0xff]
        %598 = vset.pattern.permute.xlu0 0
        %599 = vperm.xlu0 %598, %v596
        %v600 = vpop.permute.xlu0 %599
        %vm602 = vcmask 293888
        %v604 = vsel %vm602, %v580, 0
        %vm606 = vcmask 1043456
        %v608 = vsel %vm606, %v593, 0
        %v611 = vsel %vm606, %v594, 0
        %v614 = vsel %vm606, %v595, 0
        %616 = vmatprep.subr.mxu0 %v582
        %617 = vmatpush1.msra.mxu0 %v581
        %618 = vmatprep.subr.mxu0 %v585
        %619 = vmatpush1.msra.mxu0 %v584
        %620 = vmatprep.subr.mxu0 %v588
        %621 = vmatpush1.msra.mxu0 %v587
        %622 = vmatprep.subr.mxu0 %v591
        %623 = vmatpush1.msra.mxu0 %v590
        %624 = vmatprep.subr.mxu0 %v611
        %625 = vmatpush1.msra.mxu0 %v608
        %626 = vmatprep.subr.mxu0 0.0
        %627 = vmatpush1.msra.mxu0 0.0
        %628 = vmatprep.subr.mxu0 0.0
        %629 = vmatpush1.msra.mxu0 0.0
        %630 = vmatprep.subr.mxu0 0.0
        %631 = vmatpush1.msra.mxu0 0.0
        %632 = vmatprep.subr.mxu0 0.0
        %633 = vmatpush1.msra.mxu0 0.0
        %634 = vmatprep.subr.mxu0 0.0
        %635 = vmatpush1.msra.mxu0 0.0
        %636 = vmatprep.subr.mxu0 0.0
        %637 = vmatpush1.msra.mxu0 0.0
        %638 = vmatprep.subr.mxu0 0.0
        %639 = vmatpush1.msra.mxu0 0.0
        %640 = vmatprep.subr.mxu0 0.0
        %641 = vmatpush1.msra.mxu0 0.0
        %642 = vmatprep.subr.mxu0 0.0
        %643 = vmatpush1.msra.mxu0 0.0
        %644 = vmatprep.subr.mxu0 0.0
        %645 = vmatpush1.msra.mxu0 0.0
        %646 = vmatprep.subr.mxu0 0.0
        %647 = vmatpush1.msra.mxu0 0.0
        %648 = vmatprep.subr.mxu0 0.0
        %649 = vmatpush1.msra.mxu0 0.0
        %650 = vmatprep.subr.mxu0 0.0
        %651 = vmatpush1.msra.mxu0 0.0
        %652 = vmatprep.subr.mxu0 0.0
        %653 = vmatpush1.msra.mxu0 0.0
        %654 = vmatprep.subr.mxu0 0.0
        %655 = vmatpush1.msra.mxu0 0.0
        %656 = vmatprep.subr.mxu0 0.0
        %657 = vmatpush1.msra.mxu0 0.0
        %658 = vmatprep.subr.mxu0 0.0
        %659 = vmatpush1.msra.mxu0 0.0
        %660 = vmatprep.subr.mxu0 0.0
        %661 = vmatpush1.msra.mxu0 0.0
        %662 = vmatprep.subr.mxu0 0.0
        %663 = vmatpush1.msra.mxu0 0.0
        %664 = vmatprep.subr.mxu0 0.0
        %665 = vmatpush1.msra.mxu0 0.0
        %666 = vmatprep.subr.mxu0 0.0
        %667 = vmatpush1.msra.mxu0 0.0
        %668 = vmatprep.subr.mxu0 0.0
        %669 = vmatpush1.msra.mxu0 0.0
        %670 = vmatprep.subr.mxu0 0.0
        %671 = vmatpush1.msra.mxu0 0.0
        %672 = vmatprep.subr.mxu0 0.0
        %673 = vmatpush1.msra.mxu0 0.0
        %674 = vmatprep.subr.mxu0 0.0
        %675 = vmatpush1.msra.mxu0 0.0
        %676 = vmatprep.subr.mxu0 0.0
        %677 = vmatpush1.msra.mxu0 0.0
        %678 = vmatprep.subr.mxu0 0.0
        %679 = vmatpush1.msra.mxu0 0.0
        %680 = vmatprep.mubr.f32.mxu0 0.0
        %681 = vmatmul.mubr.f32.gmra.mrb[0].mxu0 %v604
        %v682 = vpop.f32.mrb[0].mxu0
        %v683 = vadd.f32 %v600, %v682
        %v684 = vpop.f32.mrb[0].mxu0
        %v685 = vadd.f32 %v600, %v684
        %686 = vdwg.mxu0
        %687 = vmatprep.subr.mxu0 0.0
        %688 = vmatpush1.msra.mxu0 %v583
        %689 = vmatprep.subr.mxu0 0.0
        %690 = vmatpush1.msra.mxu0 %v586
        %691 = vmatprep.subr.mxu0 0.0
        %692 = vmatpush1.msra.mxu0 %v589
        %693 = vmatprep.subr.mxu0 0.0
        %694 = vmatpush1.msra.mxu0 %v592
        %695 = vmatprep.subr.mxu0 0.0
        %696 = vmatpush1.msra.mxu0 %v614
        %697 = vmatprep.subr.mxu0 0.0
        %698 = vmatpush1.msra.mxu0 0.0
        %699 = vmatprep.subr.mxu0 0.0
        %700 = vmatpush1.msra.mxu0 0.0
        %701 = vmatprep.subr.mxu0 0.0
        %702 = vmatpush1.msra.mxu0 0.0
        %703 = vmatprep.subr.mxu0 0.0
        %704 = vmatpush1.msra.mxu0 0.0
        %705 = vmatprep.subr.mxu0 0.0
        %706 = vmatpush1.msra.mxu0 0.0
        %707 = vmatprep.subr.mxu0 0.0
        %708 = vmatpush1.msra.mxu0 0.0
        %709 = vmatprep.subr.mxu0 0.0
        %710 = vmatpush1.msra.mxu0 0.0
        %711 = vmatprep.subr.mxu0 0.0
        %712 = vmatpush1.msra.mxu0 0.0
        %713 = vmatprep.subr.mxu0 0.0
        %714 = vmatpush1.msra.mxu0 0.0
        %715 = vmatprep.subr.mxu0 0.0
        %716 = vmatpush1.msra.mxu0 0.0
        %717 = vmatprep.subr.mxu0 0.0
        %718 = vmatpush1.msra.mxu0 0.0
        %719 = vmatprep.subr.mxu0 0.0
        %720 = vmatpush1.msra.mxu0 0.0
        %721 = vmatprep.subr.mxu0 0.0
        %722 = vmatpush1.msra.mxu0 0.0
        %723 = vmatprep.subr.mxu0 0.0
        %724 = vmatpush1.msra.mxu0 0.0
        %725 = vmatprep.subr.mxu0 0.0
        %726 = vmatpush1.msra.mxu0 0.0
        %727 = vmatprep.subr.mxu0 0.0
        %728 = vmatpush1.msra.mxu0 0.0
        %729 = vmatprep.subr.mxu0 0.0
        %730 = vmatpush1.msra.mxu0 0.0
        %731 = vmatprep.subr.mxu0 0.0
        %732 = vmatpush1.msra.mxu0 0.0
        %733 = vmatprep.subr.mxu0 0.0
        %734 = vmatpush1.msra.mxu0 0.0
        %735 = vmatprep.subr.mxu0 0.0
        %736 = vmatpush1.msra.mxu0 0.0
        %737 = vmatprep.subr.mxu0 0.0
        %738 = vmatpush1.msra.mxu0 0.0
        %739 = vmatprep.subr.mxu0 0.0
        %740 = vmatpush1.msra.mxu0 0.0
        %741 = vmatprep.subr.mxu0 0.0
        %742 = vmatpush1.msra.mxu0 0.0
        %743 = vmatprep.subr.mxu0 0.0
        %744 = vmatpush1.msra.mxu0 0.0
        %745 = vmatprep.subr.mxu0 0.0
        %746 = vmatpush1.msra.mxu0 0.0
        %747 = vmatprep.subr.mxu0 0.0
        %748 = vmatpush1.msra.mxu0 0.0
        %749 = vmatprep.subr.mxu0 0.0
        %750 = vmatpush1.msra.mxu0 0.0
        %751 = vmatprep.mubr.f32.mxu0 0.0
        %752 = vmatmul.mubr.f32.gmra.mrb[0].mxu0 %v604
        %v753 = vpop.f32.mrb[0].mxu0
        %v754 = vadd.f32 %v600, %v753
        %v755 = vpop.f32.mrb[0].mxu0
        %756 = vdwg.mxu0
        %v757 = vmax.f32 %v683, 0.0
        %v758 = vmax.f32 %v685, 0.0
        %v759 = vmax.f32 %v754, 0.0
        %763 = vrot.lane.b32.xlu0 %v757, 127
        %v764 = vpop.permute.xlu0 %763
        %765 = vrot.lane.b32.xlu0 %v758, 127
        %v766 = vpop.permute.xlu0 %765
        %767 = vrot.lane.b32.xlu0 %v759, 127
        %v768 = vpop.permute.xlu0 %767
        %v769 = vsel %vm427, %v764, %v766
        %v770 = vsel %vm427, %v766, %v768
        %v774 = vmax.f32 %v757, %v769
        %v775 = vmax.f32 %v758, %v770
        %v776 = vmax.f32 %v759, %v768
        %777 = vrot.lane.b32.xlu0 %v757, 110
        %v778 = vpop.permute.xlu0 %777
        %779 = vrot.lane.b32.xlu0 %v758, 110
        %v780 = vpop.permute.xlu0 %779
        %781 = vrot.lane.b32.xlu0 %v759, 110
        %v782 = vpop.permute.xlu0 %781
        %v783 = vsel %vm469, %v778, %v780
        %v784 = vsel %vm469, %v780, %v782
        %v788 = vmax.f32 %v774, %v783
        %v789 = vmax.f32 %v775, %v784
        %v790 = vmax.f32 %v776, %v782
        %791 = vrot.lane.b32.xlu0 %v757, 109
        %v792 = vpop.permute.xlu0 %791
        %793 = vrot.lane.b32.xlu0 %v758, 109
        %v794 = vpop.permute.xlu0 %793
        %795 = vrot.lane.b32.xlu0 %v759, 109
        %v796 = vpop.permute.xlu0 %795
        %v797 = vsel %vm489, %v792, %v794
        %v798 = vsel %vm489, %v794, %v796
        %v802 = vmax.f32 %v788, %v797
        %v803 = vmax.f32 %v789, %v798
        %v804 = vmax.f32 %v790, %v796
        %v805 = vld [vmem:[#allocation6] sm:$0xff]
        %v806 = vld [vmem:[#allocation6 + $0x8] sm:$0xff]
        %v807 = vld [vmem:[#allocation6 + $0x10] sm:$0xff]
        %v808 = vld [vmem:[#allocation6 + $0x18] sm:$0xff]
        %v809 = vld [vmem:[#allocation6 + $0x20] sm:$0xff]
        %v810 = vld [vmem:[#allocation6 + $0x28] sm:$0xff]
        %v811 = vld [vmem:[#allocation6 + $0x30] sm:$0xff]
        %v812 = vld [vmem:[#allocation6 + $0x38] sm:$0xff]
        %v813 = vld [vmem:[#allocation6 + $0x40] sm:$0xff]
        %v814 = vld [vmem:[#allocation6 + $0x48] sm:$0xff]
        %v815 = vld [vmem:[#allocation6 + $0x50] sm:$0xff]
        %v816 = vld [vmem:[#allocation6 + $0x58] sm:$0xff]
        %v817 = vld [vmem:[#allocation6 + $0x60] sm:$0xff]
        %v818 = vld [vmem:[#allocation6 + $0x68] sm:$0xff]
        %v819 = vld [vmem:[#allocation6 + $0x70] sm:$0xff]
        %v820 = vld [vmem:[#allocation6 + $0x78] sm:$0xff]
        %v821 = vld [vmem:[#allocation6 + $0x80] sm:$0xff]
        %v822 = vld [vmem:[#allocation6 + $0x88] sm:$0xff]
        %v823 = vld [vmem:[#allocation6 + $0x90] sm:$0xff]
        %v824 = vld [vmem:[#allocation6 + $0x98] sm:$0xff]
        %v825 = vld [vmem:[#allocation6 + $0xa0] sm:$0xff]
        %v826 = vld [vmem:[#allocation6 + $0xa8] sm:$0xff]
        %v827 = vld [vmem:[#allocation6 + $0xb0] sm:$0xff]
        %v828 = vld [vmem:[#allocation6 + $0xb8] sm:$0xff]
        %v829 = vld [vmem:[#allocation6 + $0xc0] sm:$0xff]
        %v830 = vld [vmem:[#allocation6 + $0xc8] sm:$0xff]
        %v831 = vld [vmem:[#allocation6 + $0xd0] sm:$0xff]
        %v832 = vld [vmem:[#allocation6 + $0xd8] sm:$0xff]
        %v833 = vld [vmem:[#allocation6 + $0xe0] sm:$0xff]
        %v834 = vld [vmem:[#allocation6 + $0xe8] sm:$0xff]
        %v835 = vld [vmem:[#allocation6 + $0xf0] sm:$0xff]
        %v836 = vld [vmem:[#allocation6 + $0xf8] sm:$0xff]
        %v837 = vld [vmem:[#allocation6 + $0x100] sm:$0xff]
        %v838 = vld [vmem:[#allocation6 + $0x108] sm:$0x7]
        %vm839 = vcmask 89088
        %v841 = vsel %vm839, %v804, 0
        %vm843 = vcmask 1042432
        %v845 = vsel %vm843, %v838, 0
        %847 = vmatprep.subr.mxu0 0.0
        %848 = vmatpush1.msra.mxu0 %v805
        %849 = vmatprep.subr.mxu0 0.0
        %850 = vmatpush1.msra.mxu0 %v806
        %851 = vmatprep.subr.mxu0 0.0
        %852 = vmatpush1.msra.mxu0 %v807
        %853 = vmatprep.subr.mxu0 0.0
        %854 = vmatpush1.msra.mxu0 %v808
        %855 = vmatprep.subr.mxu0 0.0
        %856 = vmatpush1.msra.mxu0 %v809
        %857 = vmatprep.subr.mxu0 0.0
        %858 = vmatpush1.msra.mxu0 %v810
        %859 = vmatprep.subr.mxu0 0.0
        %860 = vmatpush1.msra.mxu0 %v811
        %861 = vmatprep.subr.mxu0 0.0
        %862 = vmatpush1.msra.mxu0 %v812
        %863 = vmatprep.subr.mxu0 0.0
        %864 = vmatpush1.msra.mxu0 %v813
        %865 = vmatprep.subr.mxu0 0.0
        %866 = vmatpush1.msra.mxu0 %v814
        %867 = vmatprep.subr.mxu0 0.0
        %868 = vmatpush1.msra.mxu0 %v815
        %869 = vmatprep.subr.mxu0 0.0
        %870 = vmatpush1.msra.mxu0 %v816
        %871 = vmatprep.subr.mxu0 0.0
        %872 = vmatpush1.msra.mxu0 %v817
        %873 = vmatprep.subr.mxu0 0.0
        %874 = vmatpush1.msra.mxu0 %v818
        %875 = vmatprep.subr.mxu0 0.0
        %876 = vmatpush1.msra.mxu0 %v819
        %877 = vmatprep.subr.mxu0 0.0
        %878 = vmatpush1.msra.mxu0 %v820
        %879 = vmatprep.subr.mxu0 0.0
        %880 = vmatpush1.msra.mxu0 %v821
        %881 = vmatprep.subr.mxu0 0.0
        %882 = vmatpush1.msra.mxu0 %v822
        %883 = vmatprep.subr.mxu0 0.0
        %884 = vmatpush1.msra.mxu0 %v823
        %885 = vmatprep.subr.mxu0 0.0
        %886 = vmatpush1.msra.mxu0 %v824
        %887 = vmatprep.subr.mxu0 0.0
        %888 = vmatpush1.msra.mxu0 %v825
        %889 = vmatprep.subr.mxu0 0.0
        %890 = vmatpush1.msra.mxu0 %v826
        %891 = vmatprep.subr.mxu0 0.0
        %892 = vmatpush1.msra.mxu0 %v827
        %893 = vmatprep.subr.mxu0 0.0
        %894 = vmatpush1.msra.mxu0 %v828
        %895 = vmatprep.subr.mxu0 0.0
        %896 = vmatpush1.msra.mxu0 %v829
        %897 = vmatprep.subr.mxu0 0.0
        %898 = vmatpush1.msra.mxu0 %v830
        %899 = vmatprep.subr.mxu0 0.0
        %900 = vmatpush1.msra.mxu0 %v831
        %901 = vmatprep.subr.mxu0 0.0
        %902 = vmatpush1.msra.mxu0 %v832
        %903 = vmatprep.subr.mxu0 0.0
        %904 = vmatpush1.msra.mxu0 %v833
        %905 = vmatprep.subr.mxu0 0.0
        %906 = vmatpush1.msra.mxu0 %v834
        %907 = vmatprep.subr.mxu0 0.0
        %908 = vmatpush1.msra.mxu0 %v835
        %909 = vmatprep.subr.mxu0 0.0
        %910 = vmatpush1.msra.mxu0 %v836
        %911 = vmatprep.mubr.f32.mxu0 %v803
        %912 = vmatmul.mubr.f32.gmra.mrb[0].mxu0 %v802
        %v913 = vpop.f32.mrb[0].mxu0
        %v914 = vadd.f32 0.0, %v913
        %v915 = vpop.f32.mrb[0].mxu0
        %916 = vdwg.mxu0
        %917 = vmatprep.subr.mxu0 0.0
        %918 = vmatpush1.msra.mxu0 %v837
        %919 = vmatprep.subr.mxu0 0.0
        %920 = vmatpush1.msra.mxu0 %v845
        %921 = vmatprep.subr.mxu0 0.0
        %922 = vmatpush1.msra.mxu0 0.0
        %923 = vmatprep.subr.mxu0 0.0
        %924 = vmatpush1.msra.mxu0 0.0
        %925 = vmatprep.subr.mxu0 0.0
        %926 = vmatpush1.msra.mxu0 0.0
        %927 = vmatprep.subr.mxu0 0.0
        %928 = vmatpush1.msra.mxu0 0.0
        %929 = vmatprep.subr.mxu0 0.0
        %930 = vmatpush1.msra.mxu0 0.0
        %931 = vmatprep.subr.mxu0 0.0
        %932 = vmatpush1.msra.mxu0 0.0
        %933 = vmatprep.subr.mxu0 0.0
        %934 = vmatpush1.msra.mxu0 0.0
        %935 = vmatprep.subr.mxu0 0.0
        %936 = vmatpush1.msra.mxu0 0.0
        %937 = vmatprep.subr.mxu0 0.0
        %938 = vmatpush1.msra.mxu0 0.0
        %939 = vmatprep.subr.mxu0 0.0
        %940 = vmatpush1.msra.mxu0 0.0
        %941 = vmatprep.subr.mxu0 0.0
        %942 = vmatpush1.msra.mxu0 0.0
        %943 = vmatprep.subr.mxu0 0.0
        %944 = vmatpush1.msra.mxu0 0.0
        %945 = vmatprep.subr.mxu0 0.0
        %946 = vmatpush1.msra.mxu0 0.0
        %947 = vmatprep.subr.mxu0 0.0
        %948 = vmatpush1.msra.mxu0 0.0
        %949 = vmatprep.subr.mxu0 0.0
        %950 = vmatpush1.msra.mxu0 0.0
        %951 = vmatprep.subr.mxu0 0.0
        %952 = vmatpush1.msra.mxu0 0.0
        %953 = vmatprep.subr.mxu0 0.0
        %954 = vmatpush1.msra.mxu0 0.0
        %955 = vmatprep.subr.mxu0 0.0
        %956 = vmatpush1.msra.mxu0 0.0
        %957 = vmatprep.subr.mxu0 0.0
        %958 = vmatpush1.msra.mxu0 0.0
        %959 = vmatprep.subr.mxu0 0.0
        %960 = vmatpush1.msra.mxu0 0.0
        %961 = vmatprep.subr.mxu0 0.0
        %962 = vmatpush1.msra.mxu0 0.0
        %963 = vmatprep.subr.mxu0 0.0
        %964 = vmatpush1.msra.mxu0 0.0
        %965 = vmatprep.subr.mxu0 0.0
        %966 = vmatpush1.msra.mxu0 0.0
        %967 = vmatprep.subr.mxu0 0.0
        %968 = vmatpush1.msra.mxu0 0.0
        %969 = vmatprep.subr.mxu0 0.0
        %970 = vmatpush1.msra.mxu0 0.0
        %971 = vmatprep.subr.mxu0 0.0
        %972 = vmatpush1.msra.mxu0 0.0
        %973 = vmatprep.subr.mxu0 0.0
        %974 = vmatpush1.msra.mxu0 0.0
        %975 = vmatprep.subr.mxu0 0.0
        %976 = vmatpush1.msra.mxu0 0.0
        %977 = vmatprep.subr.mxu0 0.0
        %978 = vmatpush1.msra.mxu0 0.0
        %979 = vmatprep.subr.mxu0 0.0
        %980 = vmatpush1.msra.mxu0 0.0
        %981 = vmatprep.mubr.f32.mxu0 0.0
        %982 = vmatmul.mubr.f32.gmra.mrb[0].mxu0 %v841
        %v983 = vpop.f32.mrb[0].mxu0
        %v984 = vadd.f32 %v914, %v983
        %v985 = vpop.f32.mrb[0].mxu0
        %986 = vdwg.mxu0
        %vm987 = vcmask 998400
        %988 = vst.msk [vmem:[#allocation4] sm:$0xff] %vm987, 0.0
        %990 = vrot.lane.b32.xlu0 %v984, 11
        %v991 = vpop.permute.xlu0 %990
        %vm993 = vcmask 154712
        %994 = vst.msk [vmem:[#allocation4] sm:$0xff] %vm993, %v991
        %995 = vrot.lane.b32.xlu0 %v984, 13
        %v996 = vpop.permute.xlu0 %995
        %vm998 = vcmask 236712
        %999 = vst.msk [vmem:[#allocation4] sm:$0xff] %vm998, %v996
        %1000 = vrot.lane.b32.xlu0 %v984, 15
        %v1001 = vpop.permute.xlu0 %1000
        %vm1003 = vcmask 318712
        %1004 = vst.msk [vmem:[#allocation4] sm:$0xff] %vm1003, %v1001
        %1005 = vrot.lane.b32.xlu0 %v984, 17
        %v1006 = vpop.permute.xlu0 %1005
        %vm1008 = vcmask 400712
        %1009 = vst.msk [vmem:[#allocation4] sm:$0xff] %vm1008, %v1006
        %1010 = vrot.lane.b32.xlu0 %v984, 19
        %v1011 = vpop.permute.xlu0 %1010
        %vm1013 = vcmask 482712
        %1014 = vst.msk [vmem:[#allocation4] sm:$0xff] %vm1013, %v1011
        %1015 = vrot.lane.b32.xlu0 %v984, 21
        %v1016 = vpop.permute.xlu0 %1015
        %vm1018 = vcmask 564712
        %1019 = vst.msk [vmem:[#allocation4] sm:$0xff] %vm1018, %v1016
        %1020 = vrot.lane.b32.xlu0 %v984, 23
        %v1021 = vpop.permute.xlu0 %1020
        %vm1023 = vcmask 646712
        %1024 = vst.msk [vmem:[#allocation4] sm:$0xff] %vm1023, %v1021
        %1025 = vrot.lane.b32.xlu0 %v984, 25
        %v1026 = vpop.permute.xlu0 %1025
        %vm1028 = vcmask 728712
        %1029 = vst.msk [vmem:[#allocation4] sm:$0xff] %vm1028, %v1026
        %v1030 = vld [vmem:[#allocation4] sm:$0xff]
        %vm1031 = vcmask 818176
        %1032 = vst.msk [vmem:[#allocation5] sm:$0xff] %vm1031, %v1030
        %v1033 = vld [vmem:[#allocation4] sm:$0xff]
        %1035 = vrot.lane.b32.xlu0 %v1033, 127
        %v1036 = vpop.permute.xlu0 %1035
        %1038 = vst.msk [vmem:[#allocation5 + $0x8] sm:$0xff] %vm1031, %v1036
        %v1039 = vld [vmem:[#allocation4] sm:$0xff]
        %1041 = vrot.lane.b32.xlu0 %v1039, 126
        %v1042 = vpop.permute.xlu0 %1041
        %1044 = vst.msk [vmem:[#allocation5 + $0x10] sm:$0xff] %vm1031, %v1042
        %v1045 = vld [vmem:[#allocation4] sm:$0xff]
        %1047 = vrot.lane.b32.xlu0 %v1045, 118
        %v1048 = vpop.permute.xlu0 %1047
        %1050 = vst.msk [vmem:[#allocation5 + $0x18] sm:$0xff] %vm1031, %v1048
        %v1051 = vld [vmem:[#allocation4] sm:$0xff]
        %1053 = vrot.lane.b32.xlu0 %v1051, 117
        %v1054 = vpop.permute.xlu0 %1053
        %1056 = vst.msk [vmem:[#allocation5 + $0x20] sm:$0xff] %vm1031, %v1054
        %v1057 = vld [vmem:[#allocation4] sm:$0xff]
        %1059 = vrot.lane.b32.xlu0 %v1057, 116
        %v1060 = vpop.permute.xlu0 %1059
        %1062 = vst.msk [vmem:[#allocation5 + $0x28] sm:$0xff] %vm1031, %v1060
        %v1063 = vld [vmem:[#allocation4] sm:$0xff]
        %1065 = vrot.lane.b32.xlu0 %v1063, 108
        %v1066 = vpop.permute.xlu0 %1065
        %1068 = vst.msk [vmem:[#allocation5 + $0x30] sm:$0xff] %vm1031, %v1066
        %v1069 = vld [vmem:[#allocation4] sm:$0xff]
        %1071 = vrot.lane.b32.xlu0 %v1069, 107
        %v1072 = vpop.permute.xlu0 %1071
        %1074 = vst.msk [vmem:[#allocation5 + $0x38] sm:$0xff] %vm1031, %v1072
        %v1075 = vld [vmem:[#allocation4] sm:$0xff]
        %1077 = vrot.lane.b32.xlu0 %v1075, 106
        %v1078 = vpop.permute.xlu0 %1077
        %1080 = vst.msk [vmem:[#allocation5 + $0x40] sm:$0xff] %vm1031, %v1078
        %v1081 = vld [vmem:[%s4] sm:$0xff]
        %v1082 = vld [vmem:[%s4 + $0x8] sm:$0xff]
        %v1083 = vld [vmem:[#allocation5] sm:$0xff]
        %v1084 = vld [vmem:[#allocation5 + $0x8] sm:$0xff]
        %v1085 = vld [vmem:[#allocation5 + $0x10] sm:$0xff]
        %v1086 = vld [vmem:[#allocation5 + $0x18] sm:$0xff]
        %v1087 = vld [vmem:[#allocation5 + $0x20] sm:$0xff]
        %v1088 = vld [vmem:[#allocation5 + $0x28] sm:$0xff]
        %v1089 = vld [vmem:[#allocation5 + $0x30] sm:$0xff]
        %v1090 = vld [vmem:[#allocation5 + $0x38] sm:$0xff]
        %v1091 = vld [vmem:[#allocation5 + $0x40] sm:$0xff]
        %v1092 = vld [vmem:[%s5] sm:$0xff]
        %v1093 = vld [vmem:[%s5 + $0x8] sm:$0xff]
        %1095 = vset.pattern.permute.xlu0 0
        %1096 = vperm.xlu0 %1095, %v1092
        %v1097 = vpop.permute.xlu0 %1096
        %1100 = vset.pattern.permute.xlu0 0
        %1101 = vperm.xlu0 %1100, %v1093
        %v1102 = vpop.permute.xlu0 %1101
        %vm1104 = vcmask 588800
        %v1106 = vsel %vm1104, %v1081, 0
        %v1109 = vsel %vm1104, %v1082, 0
        %1111 = vmatprep.subr.mxu0 0.0
        %1112 = vmatpush1.msra.mxu0 %v1083
        %1113 = vmatprep.subr.mxu0 0.0
        %1114 = vmatpush1.msra.mxu0 %v1084
        %1115 = vmatprep.subr.mxu0 0.0
        %1116 = vmatpush1.msra.mxu0 %v1085
        %1117 = vmatprep.subr.mxu0 0.0
        %1118 = vmatpush1.msra.mxu0 %v1086
        %1119 = vmatprep.subr.mxu0 0.0
        %1120 = vmatpush1.msra.mxu0 %v1087
        %1121 = vmatprep.subr.mxu0 0.0
        %1122 = vmatpush1.msra.mxu0 %v1088
        %1123 = vmatprep.subr.mxu0 0.0
        %1124 = vmatpush1.msra.mxu0 %v1089
        %1125 = vmatprep.subr.mxu0 0.0
        %1126 = vmatpush1.msra.mxu0 %v1090
        %1127 = vmatprep.subr.mxu0 0.0
        %1128 = vmatpush1.msra.mxu0 %v1091
        %1129 = vmatprep.subr.mxu0 0.0
        %1130 = vmatpush1.msra.mxu0 0.0
        %1131 = vmatprep.subr.mxu0 0.0
        %1132 = vmatpush1.msra.mxu0 0.0
        %1133 = vmatprep.subr.mxu0 0.0
        %1134 = vmatpush1.msra.mxu0 0.0
        %1135 = vmatprep.subr.mxu0 0.0
        %1136 = vmatpush1.msra.mxu0 0.0
        %1137 = vmatprep.subr.mxu0 0.0
        %1138 = vmatpush1.msra.mxu0 0.0
        %1139 = vmatprep.subr.mxu0 0.0
        %1140 = vmatpush1.msra.mxu0 0.0
        %1141 = vmatprep.subr.mxu0 0.0
        %1142 = vmatpush1.msra.mxu0 0.0
        %1143 = vmatprep.subr.mxu0 0.0
        %1144 = vmatpush1.msra.mxu0 0.0
        %1145 = vmatprep.subr.mxu0 0.0
        %1146 = vmatpush1.msra.mxu0 0.0
        %1147 = vmatprep.subr.mxu0 0.0
        %1148 = vmatpush1.msra.mxu0 0.0
        %1149 = vmatprep.subr.mxu0 0.0
        %1150 = vmatpush1.msra.mxu0 0.0
        %1151 = vmatprep.subr.mxu0 0.0
        %1152 = vmatpush1.msra.mxu0 0.0
        %1153 = vmatprep.subr.mxu0 0.0
        %1154 = vmatpush1.msra.mxu0 0.0
        %1155 = vmatprep.subr.mxu0 0.0
        %1156 = vmatpush1.msra.mxu0 0.0
        %1157 = vmatprep.subr.mxu0 0.0
        %1158 = vmatpush1.msra.mxu0 0.0
        %1159 = vmatprep.subr.mxu0 0.0
        %1160 = vmatpush1.msra.mxu0 0.0
        %1161 = vmatprep.subr.mxu0 0.0
        %1162 = vmatpush1.msra.mxu0 0.0
        %1163 = vmatprep.subr.mxu0 0.0
        %1164 = vmatpush1.msra.mxu0 0.0
        %1165 = vmatprep.subr.mxu0 0.0
        %1166 = vmatpush1.msra.mxu0 0.0
        %1167 = vmatprep.subr.mxu0 0.0
        %1168 = vmatpush1.msra.mxu0 0.0
        %1169 = vmatprep.subr.mxu0 0.0
        %1170 = vmatpush1.msra.mxu0 0.0
        %1171 = vmatprep.subr.mxu0 0.0
        %1172 = vmatpush1.msra.mxu0 0.0
        %1173 = vmatprep.subr.mxu0 0.0
        %1174 = vmatpush1.msra.mxu0 0.0
        %1175 = vmatprep.mubr.f32.mxu0 0.0
        %1176 = vmatmul.mubr.f32.gmra.mrb[0].mxu0 %v1106
        %v1177 = vpop.f32.mrb[0].mxu0
        %v1178 = vadd.f32 %v1097, %v1177
        %v1179 = vpop.f32.mrb[0].mxu0
        %1180 = vmatprep.mubr.f32.mxu0 0.0
        %1181 = vmatmul.mubr.f32.gmra.mrb[0].mxu0 %v1109
        %v1182 = vpop.f32.mrb[0].mxu0
        %v1183 = vadd.f32 %v1102, %v1182
        %v1184 = vpop.f32.mrb[0].mxu0
        %1185 = vdwg.mxu0
        %v1186 = vmax.f32 %v1178, 0.0
        %v1187 = vmax.f32 %v1183, 0.0
        %1190 = vrot.lane.b32.xlu0 %v1186, 127
        %v1191 = vpop.permute.xlu0 %1190
        %1192 = vrot.lane.b32.xlu0 %v1187, 127
        %v1193 = vpop.permute.xlu0 %1192
        %v1196 = vmax.f32 %v1186, %v1191
        %v1197 = vmax.f32 %v1187, %v1193
        %1198 = vrot.lane.b32.xlu0 %v1186, 118
        %v1199 = vpop.permute.xlu0 %1198
        %1200 = vrot.lane.b32.xlu0 %v1187, 118
        %v1201 = vpop.permute.xlu0 %1200
        %v1204 = vmax.f32 %v1196, %v1199
        %v1205 = vmax.f32 %v1197, %v1201
        %1206 = vrot.lane.b32.xlu0 %v1186, 117
        %v1207 = vpop.permute.xlu0 %1206
        %1208 = vrot.lane.b32.xlu0 %v1187, 117
        %v1209 = vpop.permute.xlu0 %1208
        %v1212 = vmax.f32 %v1204, %v1207
        %v1213 = vmax.f32 %v1205, %v1209
        %v1214 = vld [vmem:[%s6] sm:$0xff]
        %v1215 = vld [vmem:[%s6 + $0x8] sm:$0xff]
        %v1216 = vld [vmem:[%s6 + $0x10] sm:$0xff]
        %v1217 = vld [vmem:[%s6 + $0x18] sm:$0xff]
        %v1218 = vld [vmem:[%s6 + $0x20] sm:$0xff]
        %v1219 = vld [vmem:[%s6 + $0x28] sm:$0xff]
        %v1220 = vld [vmem:[%s6 + $0x30] sm:$0xff]
        %v1221 = vld [vmem:[%s6 + $0x38] sm:$0xff]
        %v1222 = vld [vmem:[%s6 + $0x40] sm:$0x7]
        %vm1223 = vcmask 547840
        %v1225 = vsel %vm1223, %v1212, 0
        %v1228 = vsel %vm1223, %v1213, 0
        %v1231 = vsel %vm843, %v1222, 0
        %1233 = vmatprep.subr.mxu0 0.0
        %1234 = vmatpush1.msra.mxu0 %v1214
        %1235 = vmatprep.subr.mxu0 0.0
        %1236 = vmatpush1.msra.mxu0 %v1215
        %1237 = vmatprep.subr.mxu0 0.0
        %1238 = vmatpush1.msra.mxu0 %v1216
        %1239 = vmatprep.subr.mxu0 0.0
        %1240 = vmatpush1.msra.mxu0 %v1217
        %1241 = vmatprep.subr.mxu0 0.0
        %1242 = vmatpush1.msra.mxu0 %v1218
        %1243 = vmatprep.subr.mxu0 0.0
        %1244 = vmatpush1.msra.mxu0 %v1219
        %1245 = vmatprep.subr.mxu0 0.0
        %1246 = vmatpush1.msra.mxu0 %v1220
        %1247 = vmatprep.subr.mxu0 0.0
        %1248 = vmatpush1.msra.mxu0 %v1221
        %1249 = vmatprep.subr.mxu0 0.0
        %1250 = vmatpush1.msra.mxu0 %v1231
        %1251 = vmatprep.subr.mxu0 0.0
        %1252 = vmatpush1.msra.mxu0 0.0
        %1253 = vmatprep.subr.mxu0 0.0
        %1254 = vmatpush1.msra.mxu0 0.0
        %1255 = vmatprep.subr.mxu0 0.0
        %1256 = vmatpush1.msra.mxu0 0.0
        %1257 = vmatprep.subr.mxu0 0.0
        %1258 = vmatpush1.msra.mxu0 0.0
        %1259 = vmatprep.subr.mxu0 0.0
        %1260 = vmatpush1.msra.mxu0 0.0
        %1261 = vmatprep.subr.mxu0 0.0
        %1262 = vmatpush1.msra.mxu0 0.0
        %1263 = vmatprep.subr.mxu0 0.0
        %1264 = vmatpush1.msra.mxu0 0.0
        %1265 = vmatprep.subr.mxu0 0.0
        %1266 = vmatpush1.msra.mxu0 0.0
        %1267 = vmatprep.subr.mxu0 0.0
        %1268 = vmatpush1.msra.mxu0 0.0
        %1269 = vmatprep.subr.mxu0 0.0
        %1270 = vmatpush1.msra.mxu0 0.0
        %1271 = vmatprep.subr.mxu0 0.0
        %1272 = vmatpush1.msra.mxu0 0.0
        %1273 = vmatprep.subr.mxu0 0.0
        %1274 = vmatpush1.msra.mxu0 0.0
        %1275 = vmatprep.subr.mxu0 0.0
        %1276 = vmatpush1.msra.mxu0 0.0
        %1277 = vmatprep.subr.mxu0 0.0
        %1278 = vmatpush1.msra.mxu0 0.0
        %1279 = vmatprep.subr.mxu0 0.0
        %1280 = vmatpush1.msra.mxu0 0.0
        %1281 = vmatprep.subr.mxu0 0.0
        %1282 = vmatpush1.msra.mxu0 0.0
        %1283 = vmatprep.subr.mxu0 0.0
        %1284 = vmatpush1.msra.mxu0 0.0
        %1285 = vmatprep.subr.mxu0 0.0
        %1286 = vmatpush1.msra.mxu0 0.0
        %1287 = vmatprep.subr.mxu0 0.0
        %1288 = vmatpush1.msra.mxu0 0.0
        %1289 = vmatprep.subr.mxu0 0.0
        %1290 = vmatpush1.msra.mxu0 0.0
        %1291 = vmatprep.subr.mxu0 0.0
        %1292 = vmatpush1.msra.mxu0 0.0
        %1293 = vmatprep.subr.mxu0 0.0
        %1294 = vmatpush1.msra.mxu0 0.0
        %1295 = vmatprep.subr.mxu0 0.0
        %1296 = vmatpush1.msra.mxu0 0.0
        %1297 = vmatprep.mubr.f32.mxu0 0.0
        %1298 = vmatmul.mubr.f32.gmra.mrb[0].mxu0 %v1225
        %v1299 = vpop.f32.mrb[0].mxu0
        %v1300 = vadd.f32 0.0, %v1299
        %v1301 = vpop.f32.mrb[0].mxu0
        %1302 = vmatprep.mubr.f32.mxu0 0.0
        %1303 = vmatmul.mubr.f32.gmra.mrb[0].mxu0 %v1228
        %v1304 = vpop.f32.mrb[0].mxu0
        %v1305 = vadd.f32 0.0, %v1304
        %v1306 = vpop.f32.mrb[0].mxu0
        %1307 = vdwg.mxu0
        %vm1308 = vcmask 130048
        %1309 = vst.msk [vmem:[%s293] sm:$0xff] %vm1308, %v1300
        %1310 = vst.msk [vmem:[%s293 + $0x8] sm:$0xff] %vm1308, %v1305
        %p1311 = scmp.lt.s32.totalorder %s19, 1
        %s1312 = scalar_select %p1311, %s19, 1
        %s1313 = smul.addr %s1312, 2
        %s1314 = smul.addr %s1313, 8
        %s1315 = scalar_lea.vmem %s7, %s1314
        // Predicated region
        $region53: #{deep_conv_encoder_forward.1} parent=47 // pred_check
          %p1316 = pneg %p189
        $region54: #{deep_conv_encoder_forward.1} parent=47 // pred_check_branch
          %1318 = sbr.rel (%p1316) target = $region56
        $region55: #{deep_conv_encoder_forward.1} parent=47 // pred_region
          _
        $region56: #{deep_conv_encoder_forward.1} parent=47 // pred_fallthru
          _
      $region48: #{deep_conv_encoder_forward.1} parent=5 // pred_fallthru
        _
      %p1319 = scmp.le.s32.totalorder 2, %s14
      // Predicated region
      $region57: #{deep_conv_encoder_forward.1} parent=5 // pred_check
        %p1320 = pneg %p1319
      $region58: #{deep_conv_encoder_forward.1} parent=5 // pred_check_branch
        %1322 = sbr.rel (%p1320) target = $region60
      $region59: #{deep_conv_encoder_forward.1} parent=5 // pred_region
        %s1323 = ssub.s32 %s14, 2
        // Predicated region
        $region61: #{deep_conv_encoder_forward.1} parent=59 // pred_check
          %p1324 = pneg %p195
        $region62: #{deep_conv_encoder_forward.1} parent=59 // pred_check_branch
          %1326 = sbr.rel (%p1324) target = $region64
        $region63: #{deep_conv_encoder_forward.1} parent=59 // pred_region
          %p1327 = scmp.lt.s32.totalorder %s20, 1
          %s1328 = scalar_select %p1327, %s20, 1
          %s1329 = smul.addr %s1328, 2
          %s1330 = smul.addr %s1329, 8
          %s1331 = scalar_lea.vmem %s7, %s1330
        $region64: #{deep_conv_encoder_forward.1} parent=59 // pred_fallthru
          _
      $region60: #{deep_conv_encoder_forward.1} parent=5 // pred_fallthru
        _
    $region6: #{deep_conv_encoder_forward.1} parent=1 // loop_footer
      %s18 = sadd.s32 1, %s14
    $region7: #{deep_conv_encoder_forward.1} parent=1 // loop_footer_branch
      %13 = sbr.rel target = $region3
    $region8: #{deep_conv_encoder_forward.1} parent=1 // loop_exit
      _
    %1332 = vsyncpa [#allocation7], 1
    %s1333 = scalar_lea.sflag [#allocation7], 1
    %1334 = vsyncpa %s1333, 1

</llo_original>
